<compile_context>
chip_gen: v7x
topology: tpu7x:2x2x1
jax: 0.10.0
libtpu: 0.0.40
codegen_flags: <defaults>
</compile_context>

<pallas_src>
import functools

import jax
import jax.numpy as jnp
from jax.experimental import pallas as pl
from jax.experimental.pallas import tpu as pltpu


def attention_kernel(hid_ref, enc_ref, w_ref, aux_ref, ctx_ref,
                     *, block_b, seq, dim):
    TB, S, D = block_b, seq, dim

    enc3 = enc_ref[...]                       # (TB, S, D) f32
    enc2 = enc3.reshape(TB * S, D)            # layout-free merge (S % 8 == 0)

    # Packed parameters (static sublane slices of the resident VMEM blocks).
    w1a = w_ref[0 * D:1 * D, :]               # multiplies encoder half
    w1b = w_ref[1 * D:2 * D, :]               # multiplies hidden half
    w2 = w_ref[2 * D:3 * D, :]
    w3 = w_ref[3 * D:4 * D, :]
    b1 = aux_ref[0:1, :]
    b2 = aux_ref[1:2, :]
    b3 = aux_ref[2:3, :]
    w4 = aux_ref[3:4, :]                      # to_weight row, no bias

    # Hidden half of the concat matmul once per batch row (bias b1 folded in),
    # broadcast over S below — avoids an S-times-larger matmul.
    hid_c = jnp.dot(hid_ref[...], w1b,
                    preferred_element_type=jnp.float32) + b1       # (TB, D)

    # Three tanh-MLP layers as single M = TB*S matmuls.
    # NOTE(v6e/v7x): the tanh chain + enc read dominates; a bf16 activation
    # path (f32 accumulate via preferred_element_type) is the next win there.
    h = jnp.dot(enc2, w1a, preferred_element_type=jnp.float32)     # (TB*S, D)
    h = jnp.tanh(h.reshape(TB, S, D) + hid_c[:, None, :]).reshape(TB * S, D)
    h = jnp.tanh(jnp.dot(h, w2, preferred_element_type=jnp.float32) + b2)
    h = jnp.tanh(jnp.dot(h, w3, preferred_element_type=jnp.float32) + b3)

    # Score projection: VPU multiply + lane reduce (no wasted N=1 MXU pass).
    h3 = h.reshape(TB, S, D)
    e = jnp.sum(h3 * w4[None, :, :], axis=-1)                      # (TB, S)

    # Softmax over the (fully in-block) sequence axis.  Exact reciprocal: the
    # denominator is only (TB, 1), so an exact VPU divide is essentially free
    # and keeps the kernel numerically tight vs. the reference.
    m = jnp.max(e, axis=-1, keepdims=True)                         # (TB, 1)
    p = jnp.exp(e - m)                                             # (TB, S)
    denom = jnp.sum(p, axis=-1, keepdims=True)                     # (TB, 1)

    # context = softmax(e) @ enc, as a short unrolled FMA loop over S on
    # (TB, D) slices — no block-sized (TB, S, D) product temporary and no
    # sublane-axis reduction.  Normalization folded into the final scale.
    acc = p[:, 0:1] * enc3[:, 0, :]                                # (TB, D)
    for s in range(1, S):                                          # S is static
        acc = acc + p[:, s:s + 1] * enc3[:, s, :]

    ctx_ref[...] = acc * (1.0 / denom)


def _pick_block_b(B, S, D, itemsize=4, target_bytes=2 << 20):
    """Batch-block rows per grid step, sized for DMA/VMEM rather than MXU M.

    Targets a ~2 MiB (TB, S, D) encoder tile per pipeline buffer (small tiles
    leave ~3x of HBM roofline on the table and the ~0.35 us per-grid-step
    overhead dominates), rounded to a multiple of 8 sublane rows.  VMEM use is
    roughly 2 x enc tile (double buffer) + ~2 enc-tile-sized f32 temporaries +
    resident weights ~= 8-10 MiB, inside the 32 MiB default scoped VMEM on
    v5e/v6e/v7x (v7x's physical VMEM is 64 MiB — half of v5e/v6e — so the tile
    is intentionally kept at ~2 MiB instead of being scaled up).  When the
    batch is large enough the block is also capped at half the batch so there
    are >= 2 grid steps and dimension_semantics=("parallel",) can split work
    across v7x's two TensorCores.
    """
    row_bytes = S * D * itemsize
    tb = max(8, (target_bytes // row_bytes) // 8 * 8)
    b_pad8 = -(-B // 8) * 8
    if b_pad8 > 8:                       # keep at least two blocks (v7x: 2 TCs)
        half = (b_pad8 // 2 + 7) // 8 * 8
        tb = min(tb, max(8, half))
    return min(tb, b_pad8)


def attention_forward(hidden_state, encoder_outputs, w_pack, aux, *, block_b=None):
    """hidden_state: (B, D); encoder_outputs: (B, S, D) -> context (B, D)."""
    B, S, D = encoder_outputs.shape
    hidden_state = hidden_state.astype(jnp.float32)
    encoder_outputs = encoder_outputs.astype(jnp.float32)
    # NOTE(v5e): store/DMA encoder_outputs as bf16 and upcast on load (keep
    # math f32) to halve the dominant HBM read; kept f32 here for a tight test.

    if block_b is None:
        block_b = _pick_block_b(B, S, D)

    n_blocks = -(-B // block_b)
    Bp = n_blocks * block_b
    if Bp != B:
        # Zero padding is safe: zero encoder rows give zero context regardless
        # of the bias-driven scores; padded rows are sliced off below.
        pad = Bp - B
        hidden_state = jnp.pad(hidden_state, ((0, pad), (0, 0)))
        encoder_outputs = jnp.pad(encoder_outputs, ((0, pad), (0, 0), (0, 0)))

    kernel = functools.partial(attention_kernel, block_b=block_b, seq=S, dim=D)
    full = lambda b: (0, 0)

    out = pl.pallas_call(
        kernel,
        out_shape=jax.ShapeDtypeStruct((Bp, D), jnp.float32),
        grid_spec=pltpu.PrefetchScalarGridSpec(
            num_scalar_prefetch=0,
            grid=(n_blocks,),
            in_specs=[
                pl.BlockSpec((block_b, D), lambda b: (b, 0)),        # hidden_state
                pl.BlockSpec((block_b, S, D), lambda b: (b, 0, 0)),  # encoder_outputs
                pl.BlockSpec((4 * D, D), full),                      # W1a|W1b|W2|W3
                pl.BlockSpec((4, D), full),                          # b1|b2|b3|w4
            ],
            # Output last dim is D=32 (<128) -> masked partial stores; output
            # traffic is S x smaller than the encoder read, so left as-is.
            out_specs=pl.BlockSpec((block_b, D), lambda b: (b, 0)),
        ),
        compiler_params=pltpu.CompilerParams(
            dimension_semantics=("parallel",)),
    )(hidden_state, encoder_outputs, w_pack, aux)
    return out[:B]


def xavier_normal(key, shape_out_in):
    """Mimics nn.init.xavier_normal_ for a (out_features, in_features) weight."""
    fan_out, fan_in = shape_out_in
    std = jnp.sqrt(2.0 / (fan_in + fan_out))
    return std * jax.random.normal(key, shape_out_in, dtype=jnp.float32)


def init_params(key, dim):
    """Synthetic parameters matching the module, pre-packed for the kernel."""
    k1, k2, k3, k4, kb1, kb2, kb3 = jax.random.split(key, 7)
    # PyTorch nn.Linear stores W as (out, in). Kernel uses (in, out).
    W1 = xavier_normal(k1, (dim, 2 * dim))          # linear1
    W2 = xavier_normal(k2, (dim, dim))              # linear2
    W3 = xavier_normal(k3, (dim, dim))              # linear3
    W4 = xavier_normal(k4, (1, dim))                # to_weight (no bias)

    W1T = W1.T                                      # (2*dim, dim)
    w_pack = jnp.concatenate([W1T[:dim], W1T[dim:], W2.T, W3.T], axis=0)  # (4D, D)

    bound1 = 1.0 / jnp.sqrt(2.0 * dim)
    bound = 1.0 / jnp.sqrt(1.0 * dim)
    b1 = jax.random.uniform(kb1, (1, dim), jnp.float32, -bound1, bound1)
    b2 = jax.random.uniform(kb2, (1, dim), jnp.float32, -bound, bound)
    b3 = jax.random.uniform(kb3, (1, dim), jnp.float32, -bound, bound)
    aux = jnp.concatenate([b1, b2, b3, W4], axis=0)                       # (4, D)
    return w_pack, aux


def attention_reference(hidden_state, encoder_outputs, w_pack, aux):
    """Pure-JAX reference mirroring the PyTorch forward (f32, HIGHEST precision)."""
    B, S, D = encoder_outputs.shape
    hp = jax.lax.Precision.HIGHEST
    w1a, w1b = w_pack[0:D], w_pack[D:2 * D]
    w2, w3 = w_pack[2 * D:3 * D], w_pack[3 * D:4 * D]
    b1, b2, b3, w4 = aux[0:1], aux[1:2], aux[2:3], aux[3:4]

    hid = jnp.broadcast_to(hidden_state[:, None, :], (B, S, D))
    x = jnp.concatenate([encoder_outputs, hid], axis=2).reshape(-1, 2 * D)
    W1 = jnp.concatenate([w1a, w1b], axis=0)        # (2D, D)
    x = jnp.tanh(jnp.dot(x, W1, precision=hp) + b1)
    x = jnp.tanh(jnp.dot(x, w2, precision=hp) + b2)
    x = jnp.tanh(jnp.dot(x, w3, precision=hp) + b3)
    e = jnp.dot(x, w4.T, precision=hp).reshape(B, S)
    alpha = jax.nn.softmax(e, axis=1)
    return jnp.einsum("bs,bsd->bd", alpha, encoder_outputs, precision=hp)


if __name__ == "__main__":
    B, S, D = 2, 8, 32
    key = jax.random.PRNGKey(0)
    kp, kh, ke = jax.random.split(key, 3)

    w_pack, aux = init_params(kp, D)
    hidden_state = jax.random.normal(kh, (B, D), dtype=jnp.float32)
    encoder_outputs = jax.random.normal(ke, (B, S, D), dtype=jnp.float32)

    ctx = attention_forward(hidden_state, encoder_outputs, w_pack, aux)
    ctx = jax.block_until_ready(ctx)

    ref = attention_reference(hidden_state, encoder_outputs, w_pack, aux)
    assert ctx.shape == (B, D)
    max_err = jnp.max(jnp.abs(ctx - ref))
    # Exact f32 everywhere (no approx reciprocal, HIGHEST-precision reference);
    # 2e-3 leaves headroom for EUP tanh/exp vs XLA implementation differences.
    assert jnp.allclose(ctx, ref, atol=2e-3, rtol=2e-3), (
        f"mismatch vs reference (max abs err {max_err})")

    print("KERNEL_OK")
</pallas_src>

<mosaic_0001>
module attributes {stable_mosaic.version = 11 : i64} {
  func.func @attention_kernel(%arg0: i32, %arg1: memref<8x32xf32, #tpu.memory_space<vmem>>, %arg2: memref<8x8x32xf32, #tpu.memory_space<vmem>>, %arg3: memref<128x32xf32, #tpu.memory_space<vmem>>, %arg4: memref<4x32xf32, #tpu.memory_space<vmem>>, %arg5: memref<8x32xf32, #tpu.memory_space<vmem>>) attributes {dimension_semantics = [#tpu.dimension_semantics<parallel>], iteration_bounds = array<i64: 1>, scalar_prefetch = 0 : i64, scratch_operands = 0 : i64, tpu.core_type = #tpu.core_type<tc>, window_params = [{transform_indices = @transform_0, window_bounds = array<i64: 8, 32>}, {transform_indices = @transform_1, window_bounds = array<i64: 8, 8, 32>}, {pipeline_mode = #tpu.pipeline_mode<synchronous>, transform_indices = @transform_2, window_bounds = array<i64: 128, 32>}, {pipeline_mode = #tpu.pipeline_mode<synchronous>, transform_indices = @transform_3, window_bounds = array<i64: 4, 32>}, {transform_indices = @transform_4, window_bounds = array<i64: 8, 32>}]} {
    %c0 = arith.constant 0 : index
    %c0_0 = arith.constant 0 : index
    %c0_1 = arith.constant 0 : index
    %0 = vector.load %arg2[%c0, %c0_0, %c0_1] : memref<8x8x32xf32, #tpu.memory_space<vmem>>, vector<8x8x32xf32>
    %1 = vector.shape_cast %0 : vector<8x8x32xf32> to vector<64x32xf32>
    %c0_2 = arith.constant 0 : index
    %c0_3 = arith.constant 0 : index
    %2 = vector.load %arg3[%c0_2, %c0_3] : memref<128x32xf32, #tpu.memory_space<vmem>>, vector<32x32xf32>
    %c32 = arith.constant 32 : index
    %c0_4 = arith.constant 0 : index
    %3 = vector.load %arg3[%c32, %c0_4] : memref<128x32xf32, #tpu.memory_space<vmem>>, vector<32x32xf32>
    %c64 = arith.constant 64 : index
    %c0_5 = arith.constant 0 : index
    %4 = vector.load %arg3[%c64, %c0_5] : memref<128x32xf32, #tpu.memory_space<vmem>>, vector<32x32xf32>
    %c96 = arith.constant 96 : index
    %c0_6 = arith.constant 0 : index
    %5 = vector.load %arg3[%c96, %c0_6] : memref<128x32xf32, #tpu.memory_space<vmem>>, vector<32x32xf32>
    %c0_7 = arith.constant 0 : index
    %c0_8 = arith.constant 0 : index
    %6 = vector.load %arg4[%c0_7, %c0_8] : memref<4x32xf32, #tpu.memory_space<vmem>>, vector<1x32xf32>
    %c1 = arith.constant 1 : index
    %c0_9 = arith.constant 0 : index
    %7 = vector.load %arg4[%c1, %c0_9] : memref<4x32xf32, #tpu.memory_space<vmem>>, vector<1x32xf32>
    %c2 = arith.constant 2 : index
    %c0_10 = arith.constant 0 : index
    %8 = vector.load %arg4[%c2, %c0_10] : memref<4x32xf32, #tpu.memory_space<vmem>>, vector<1x32xf32>
    %c3 = arith.constant 3 : index
    %c0_11 = arith.constant 0 : index
    %9 = vector.load %arg4[%c3, %c0_11] : memref<4x32xf32, #tpu.memory_space<vmem>>, vector<1x32xf32>
    %c0_12 = arith.constant 0 : index
    %c0_13 = arith.constant 0 : index
    %10 = vector.load %arg1[%c0_12, %c0_13] : memref<8x32xf32, #tpu.memory_space<vmem>>, vector<8x32xf32>
    %cst = arith.constant dense<0.000000e+00> : vector<8x32xf32>
    %11 = tpu.matmul %10, %3, %cst {dimension_numbers = #tpu.dot_dimension_numbers<[1], [0], [0], [1], [0, 0, 1, 1], [], []>} : vector<8x32xf32>, vector<32x32xf32>, vector<8x32xf32> -> vector<8x32xf32>
    %12 = vector.broadcast %6 : vector<1x32xf32> to vector<8x32xf32>
    %13 = arith.addf %11, %12 : vector<8x32xf32>
    %cst_14 = arith.constant dense<0.000000e+00> : vector<64x32xf32>
    %14 = tpu.matmul %1, %2, %cst_14 {dimension_numbers = #tpu.dot_dimension_numbers<[1], [0], [0], [1], [0, 0, 1, 1], [], []>} : vector<64x32xf32>, vector<32x32xf32>, vector<64x32xf32> -> vector<64x32xf32>
    %15 = vector.shape_cast %14 : vector<64x32xf32> to vector<8x8x32xf32>
    %16 = vector.shape_cast %13 : vector<8x32xf32> to vector<8x1x32xf32>
    %17 = vector.broadcast %16 : vector<8x1x32xf32> to vector<8x8x32xf32>
    %18 = arith.addf %15, %17 : vector<8x8x32xf32>
    %19 = math.tanh %18 : vector<8x8x32xf32>
    %20 = vector.shape_cast %19 : vector<8x8x32xf32> to vector<64x32xf32>
    %cst_15 = arith.constant dense<0.000000e+00> : vector<64x32xf32>
    %21 = tpu.matmul %20, %4, %cst_15 {dimension_numbers = #tpu.dot_dimension_numbers<[1], [0], [0], [1], [0, 0, 1, 1], [], []>} : vector<64x32xf32>, vector<32x32xf32>, vector<64x32xf32> -> vector<64x32xf32>
    %22 = vector.broadcast %7 : vector<1x32xf32> to vector<64x32xf32>
    %23 = arith.addf %21, %22 : vector<64x32xf32>
    %24 = math.tanh %23 : vector<64x32xf32>
    %cst_16 = arith.constant dense<0.000000e+00> : vector<64x32xf32>
    %25 = tpu.matmul %24, %5, %cst_16 {dimension_numbers = #tpu.dot_dimension_numbers<[1], [0], [0], [1], [0, 0, 1, 1], [], []>} : vector<64x32xf32>, vector<32x32xf32>, vector<64x32xf32> -> vector<64x32xf32>
    %26 = vector.broadcast %8 : vector<1x32xf32> to vector<64x32xf32>
    %27 = arith.addf %25, %26 : vector<64x32xf32>
    %28 = math.tanh %27 : vector<64x32xf32>
    %29 = vector.shape_cast %28 : vector<64x32xf32> to vector<8x8x32xf32>
    %30 = vector.shape_cast %9 : vector<1x32xf32> to vector<1x1x32xf32>
    %31 = vector.broadcast %30 : vector<1x1x32xf32> to vector<8x8x32xf32>
    %32 = arith.mulf %29, %31 : vector<8x8x32xf32>
    %cst_17 = arith.constant dense<0.000000e+00> : vector<8x8xf32>
    %33 = vector.multi_reduction <add>, %32, %cst_17 [2] : vector<8x8x32xf32> to vector<8x8xf32>
    %cst_18 = arith.constant dense<0xFF800000> : vector<8xf32>
    %34 = vector.multi_reduction <maximumf>, %33, %cst_18 [1] : vector<8x8xf32> to vector<8xf32>
    %35 = vector.shape_cast %34 : vector<8xf32> to vector<8x1xf32>
    %36 = vector.broadcast %35 : vector<8x1xf32> to vector<8x8xf32>
    %37 = arith.subf %33, %36 : vector<8x8xf32>
    %38 = math.exp %37 : vector<8x8xf32>
    %cst_19 = arith.constant dense<0.000000e+00> : vector<8xf32>
    %39 = vector.multi_reduction <add>, %38, %cst_19 [1] : vector<8x8xf32> to vector<8xf32>
    %40 = vector.shape_cast %39 : vector<8xf32> to vector<8x1xf32>
    %41 = vector.extract_strided_slice %38 {offsets = [0, 0], sizes = [8, 1], strides = [1, 1]} : vector<8x8xf32> to vector<8x1xf32>
    %42 = vector.extract_strided_slice %0 {offsets = [0, 0, 0], sizes = [8, 1, 32], strides = [1, 1, 1]} : vector<8x8x32xf32> to vector<8x1x32xf32>
    %43 = vector.shape_cast %42 : vector<8x1x32xf32> to vector<8x32xf32>
    %44 = vector.broadcast %41 : vector<8x1xf32> to vector<8x32xf32>
    %45 = arith.mulf %44, %43 : vector<8x32xf32>
    %46 = vector.extract_strided_slice %38 {offsets = [0, 1], sizes = [8, 1], strides = [1, 1]} : vector<8x8xf32> to vector<8x1xf32>
    %47 = vector.extract_strided_slice %0 {offsets = [0, 1, 0], sizes = [8, 1, 32], strides = [1, 1, 1]} : vector<8x8x32xf32> to vector<8x1x32xf32>
    %48 = vector.shape_cast %47 : vector<8x1x32xf32> to vector<8x32xf32>
    %49 = vector.broadcast %46 : vector<8x1xf32> to vector<8x32xf32>
    %50 = arith.mulf %49, %48 : vector<8x32xf32>
    %51 = arith.addf %45, %50 : vector<8x32xf32>
    %52 = vector.extract_strided_slice %38 {offsets = [0, 2], sizes = [8, 1], strides = [1, 1]} : vector<8x8xf32> to vector<8x1xf32>
    %53 = vector.extract_strided_slice %0 {offsets = [0, 2, 0], sizes = [8, 1, 32], strides = [1, 1, 1]} : vector<8x8x32xf32> to vector<8x1x32xf32>
    %54 = vector.shape_cast %53 : vector<8x1x32xf32> to vector<8x32xf32>
    %55 = vector.broadcast %52 : vector<8x1xf32> to vector<8x32xf32>
    %56 = arith.mulf %55, %54 : vector<8x32xf32>
    %57 = arith.addf %51, %56 : vector<8x32xf32>
    %58 = vector.extract_strided_slice %38 {offsets = [0, 3], sizes = [8, 1], strides = [1, 1]} : vector<8x8xf32> to vector<8x1xf32>
    %59 = vector.extract_strided_slice %0 {offsets = [0, 3, 0], sizes = [8, 1, 32], strides = [1, 1, 1]} : vector<8x8x32xf32> to vector<8x1x32xf32>
    %60 = vector.shape_cast %59 : vector<8x1x32xf32> to vector<8x32xf32>
    %61 = vector.broadcast %58 : vector<8x1xf32> to vector<8x32xf32>
    %62 = arith.mulf %61, %60 : vector<8x32xf32>
    %63 = arith.addf %57, %62 : vector<8x32xf32>
    %64 = vector.extract_strided_slice %38 {offsets = [0, 4], sizes = [8, 1], strides = [1, 1]} : vector<8x8xf32> to vector<8x1xf32>
    %65 = vector.extract_strided_slice %0 {offsets = [0, 4, 0], sizes = [8, 1, 32], strides = [1, 1, 1]} : vector<8x8x32xf32> to vector<8x1x32xf32>
    %66 = vector.shape_cast %65 : vector<8x1x32xf32> to vector<8x32xf32>
    %67 = vector.broadcast %64 : vector<8x1xf32> to vector<8x32xf32>
    %68 = arith.mulf %67, %66 : vector<8x32xf32>
    %69 = arith.addf %63, %68 : vector<8x32xf32>
    %70 = vector.extract_strided_slice %38 {offsets = [0, 5], sizes = [8, 1], strides = [1, 1]} : vector<8x8xf32> to vector<8x1xf32>
    %71 = vector.extract_strided_slice %0 {offsets = [0, 5, 0], sizes = [8, 1, 32], strides = [1, 1, 1]} : vector<8x8x32xf32> to vector<8x1x32xf32>
    %72 = vector.shape_cast %71 : vector<8x1x32xf32> to vector<8x32xf32>
    %73 = vector.broadcast %70 : vector<8x1xf32> to vector<8x32xf32>
    %74 = arith.mulf %73, %72 : vector<8x32xf32>
    %75 = arith.addf %69, %74 : vector<8x32xf32>
    %76 = vector.extract_strided_slice %38 {offsets = [0, 6], sizes = [8, 1], strides = [1, 1]} : vector<8x8xf32> to vector<8x1xf32>
    %77 = vector.extract_strided_slice %0 {offsets = [0, 6, 0], sizes = [8, 1, 32], strides = [1, 1, 1]} : vector<8x8x32xf32> to vector<8x1x32xf32>
    %78 = vector.shape_cast %77 : vector<8x1x32xf32> to vector<8x32xf32>
    %79 = vector.broadcast %76 : vector<8x1xf32> to vector<8x32xf32>
    %80 = arith.mulf %79, %78 : vector<8x32xf32>
    %81 = arith.addf %75, %80 : vector<8x32xf32>
    %82 = vector.extract_strided_slice %38 {offsets = [0, 7], sizes = [8, 1], strides = [1, 1]} : vector<8x8xf32> to vector<8x1xf32>
    %83 = vector.extract_strided_slice %0 {offsets = [0, 7, 0], sizes = [8, 1, 32], strides = [1, 1, 1]} : vector<8x8x32xf32> to vector<8x1x32xf32>
    %84 = vector.shape_cast %83 : vector<8x1x32xf32> to vector<8x32xf32>
    %85 = vector.broadcast %82 : vector<8x1xf32> to vector<8x32xf32>
    %86 = arith.mulf %85, %84 : vector<8x32xf32>
    %87 = arith.addf %81, %86 : vector<8x32xf32>
    %cst_20 = arith.constant 1.000000e+00 : f32
    %88 = vector.broadcast %cst_20 : f32 to vector<8x1xf32>
    %89 = arith.divf %88, %40 : vector<8x1xf32>
    %90 = vector.broadcast %89 : vector<8x1xf32> to vector<8x32xf32>
    %91 = arith.mulf %87, %90 : vector<8x32xf32>
    %c0_21 = arith.constant 0 : index
    %c0_22 = arith.constant 0 : index
    %92 = vector.load %arg5[%c0_21, %c0_22] : memref<8x32xf32, #tpu.memory_space<vmem>>, vector<8x32xf32>
    tpu.vector_store %arg5[%c0_21, %c0_22], %91 {strides = array<i32>} : memref<8x32xf32, #tpu.memory_space<vmem>>, vector<8x32xf32>,
    return
  }
  func.func @transform_0(%arg0: i32) -> (i32, i32) {
    %c0_i32 = arith.constant 0 : i32
    %c0_i32_0 = arith.constant 0 : i32
    return %arg0, %c0_i32 : i32, i32
  }
  func.func @transform_1(%arg0: i32) -> (i32, i32, i32) {
    %c0_i32 = arith.constant 0 : i32
    %c0_i32_0 = arith.constant 0 : i32
    %c0_i32_1 = arith.constant 0 : i32
    return %arg0, %c0_i32, %c0_i32_0 : i32, i32, i32
  }
  func.func @transform_2(%arg0: i32) -> (i32, i32) {
    %c0_i32 = arith.constant 0 : i32
    %c0_i32_0 = arith.constant 0 : i32
    %c0_i32_1 = arith.constant 0 : i32
    return %c0_i32, %c0_i32_0 : i32, i32
  }
  func.func @transform_3(%arg0: i32) -> (i32, i32) {
    %c0_i32 = arith.constant 0 : i32
    %c0_i32_0 = arith.constant 0 : i32
    %c0_i32_1 = arith.constant 0 : i32
    return %c0_i32, %c0_i32_0 : i32, i32
  }
  func.func @transform_4(%arg0: i32) -> (i32, i32) {
    %c0_i32 = arith.constant 0 : i32
    %c0_i32_0 = arith.constant 0 : i32
    return %arg0, %c0_i32 : i32, i32
  }
}

</mosaic_0001>

<llo_original>
// kernel: tpu_custom_call.1
$region0: #{tpu_custom_call.1}
  #allocation0 [shape = 'u32[]', space=smem, size = 0x4, offset = 0x4, fixed_abs, tag = 'smem constant byte address 0x4 - core index']
  #allocation1 [shape = 'u32[144,128]{1,0:T(1,128)}', space=vmem, size = 0x12000, scoped, tag = 'internal scratch']
  %s0 = inlined_call_operand.vmem [shape: f32[8,32], index: 0, kind: input, shape index: {}]
  %s1 = inlined_call_operand.vmem [shape: f32[8,8,32], index: 1, kind: input, shape index: {}]
  %s2 = inlined_call_operand.vmem [shape: f32[128,32], index: 2, kind: input, shape index: {}]
  %s3 = inlined_call_operand.vmem [shape: f32[4,32], index: 3, kind: input, shape index: {}]
  %s4 = inlined_call_operand.hbm [shape: f32[8,32], index: 4, kind: output, shape index: {}]
  %s5 = sld [smem:[#allocation0]]
  $region26: #{tpu_custom_call.1} parent=0
    _
  %s7 = ssub.s32 1, %s5
  %s8 = scalar_select 0, %s7, %s5
  $region1: #{tpu_custom_call.1} parent=0
    #allocation2 [shape = 'u8[4096]{0}', space=vmem, size = 0x1000, scoped, tag = 'output window, operand 0, single buffered']
    #allocation3 [shape = 's32[1]{0}', space=sflag, size = 0x4, scoped, tag = 'scoped memory for tpu_custom_call.1']
    %9 = vsyncpa [#allocation3], 0
    // Predicated region
    $region2: #{tpu_custom_call.1} parent=1 // pred_check
      _
    $region3: #{tpu_custom_call.1} parent=1 // pred_check_branch
      %11 = sbr.rel (0) target = $region5
    $region4: #{tpu_custom_call.1} parent=1 // pred_region
      _
    $region5: #{tpu_custom_call.1} parent=1 // pred_fallthru
      _
    // Predicated region
    $region6: #{tpu_custom_call.1} parent=1 // pred_check
      _
    $region7: #{tpu_custom_call.1} parent=1 // pred_check_branch
      %13 = sbr.rel (0) target = $region9
    $region8: #{tpu_custom_call.1} parent=1 // pred_region
      _
    $region9: #{tpu_custom_call.1} parent=1 // pred_fallthru
      _
    // Predicated region
    $region10: #{tpu_custom_call.1} parent=1 // pred_check
      _
    $region11: #{tpu_custom_call.1} parent=1 // pred_check_branch
      %15 = sbr.rel (0) target = $region13
    $region12: #{tpu_custom_call.1} parent=1 // pred_region
      _
    $region13: #{tpu_custom_call.1} parent=1 // pred_fallthru
      _
    // Predicated region
    $region14: #{tpu_custom_call.1} parent=1 // pred_check
      _
    $region15: #{tpu_custom_call.1} parent=1 // pred_check_branch
      %17 = sbr.rel (0) target = $region17
    $region16: #{tpu_custom_call.1} parent=1 // pred_region
      _
    $region17: #{tpu_custom_call.1} parent=1 // pred_fallthru
      _
    %v18 = vld [vmem:[%s1] sm:$0xff]
    %v19 = vld [vmem:[%s1 + $0x8] sm:$0xff]
    %v20 = vld [vmem:[%s1 + $0x10] sm:$0xff]
    %v21 = vld [vmem:[%s1 + $0x18] sm:$0xff]
    %v22 = vld [vmem:[%s1 + $0x20] sm:$0xff]
    %v23 = vld [vmem:[%s1 + $0x28] sm:$0xff]
    %v24 = vld [vmem:[%s1 + $0x30] sm:$0xff]
    %v25 = vld [vmem:[%s1 + $0x38] sm:$0xff]
    %v26 = vld [vmem:[%s2] sm:$0xff]
    %v27 = vld [vmem:[%s2 + $0x8] sm:$0xff]
    %v28 = vld [vmem:[%s2 + $0x10] sm:$0xff]
    %v29 = vld [vmem:[%s2 + $0x18] sm:$0xff]
    %v30 = vld [vmem:[%s2 + $0x20] sm:$0xff]
    %v31 = vld [vmem:[%s2 + $0x28] sm:$0xff]
    %v32 = vld [vmem:[%s2 + $0x30] sm:$0xff]
    %v33 = vld [vmem:[%s2 + $0x38] sm:$0xff]
    %v34 = vld [vmem:[%s2 + $0x40] sm:$0xff]
    %v35 = vld [vmem:[%s2 + $0x48] sm:$0xff]
    %v36 = vld [vmem:[%s2 + $0x50] sm:$0xff]
    %v37 = vld [vmem:[%s2 + $0x58] sm:$0xff]
    %v38 = vld [vmem:[%s2 + $0x60] sm:$0xff]
    %v39 = vld [vmem:[%s2 + $0x68] sm:$0xff]
    %v40 = vld [vmem:[%s2 + $0x70] sm:$0xff]
    %v41 = vld [vmem:[%s2 + $0x78] sm:$0xff]
    %v42 = vld [vmem:[%s3] sm:$0x1]
    %v43 = vld [vmem:[%s3 + $0x1] sm:$0x1]
    %v44 = vld [vmem:[%s3 + $0x2] sm:$0x1]
    %v45 = vld [vmem:[%s3 + $0x3] sm:$0x1]
    %v46 = vld [vmem:[%s0] sm:$0xff]
    %v47 = vlaneseq
    %v48 = vshrl.u32 %v47, 7
    %v49 = vsub.s32 0, %v48
    %v50 = vrot.slane %v42, %v49
    %vm51 = vcmask 261120
    %v53 = vsel %vm51, %v46, 0
    %55 = vmatprep.subr.mxu0 0.0
    %56 = vmatpush1.msra.mxu0 %v30
    %57 = vmatprep.subr.mxu0 0.0
    %58 = vmatpush1.msra.mxu0 %v31
    %59 = vmatprep.subr.mxu0 0.0
    %60 = vmatpush1.msra.mxu0 %v32
    %61 = vmatprep.subr.mxu0 0.0
    %62 = vmatpush1.msra.mxu0 %v33
    %63 = vmatprep.subr.mxu0 0.0
    %64 = vmatpush1.msra.mxu0 0.0
    %65 = vmatprep.subr.mxu0 0.0
    %66 = vmatpush1.msra.mxu0 0.0
    %67 = vmatprep.subr.mxu0 0.0
    %68 = vmatpush1.msra.mxu0 0.0
    %69 = vmatprep.subr.mxu0 0.0
    %70 = vmatpush1.msra.mxu0 0.0
    %71 = vmatprep.subr.mxu0 0.0
    %72 = vmatpush1.msra.mxu0 0.0
    %73 = vmatprep.subr.mxu0 0.0
    %74 = vmatpush1.msra.mxu0 0.0
    %75 = vmatprep.subr.mxu0 0.0
    %76 = vmatpush1.msra.mxu0 0.0
    %77 = vmatprep.subr.mxu0 0.0
    %78 = vmatpush1.msra.mxu0 0.0
    %79 = vmatprep.subr.mxu0 0.0
    %80 = vmatpush1.msra.mxu0 0.0
    %81 = vmatprep.subr.mxu0 0.0
    %82 = vmatpush1.msra.mxu0 0.0
    %83 = vmatprep.subr.mxu0 0.0
    %84 = vmatpush1.msra.mxu0 0.0
    %85 = vmatprep.subr.mxu0 0.0
    %86 = vmatpush1.msra.mxu0 0.0
    %87 = vmatprep.subr.mxu0 0.0
    %88 = vmatpush1.msra.mxu0 0.0
    %89 = vmatprep.subr.mxu0 0.0
    %90 = vmatpush1.msra.mxu0 0.0
    %91 = vmatprep.subr.mxu0 0.0
    %92 = vmatpush1.msra.mxu0 0.0
    %93 = vmatprep.subr.mxu0 0.0
    %94 = vmatpush1.msra.mxu0 0.0
    %95 = vmatprep.subr.mxu0 0.0
    %96 = vmatpush1.msra.mxu0 0.0
    %97 = vmatprep.subr.mxu0 0.0
    %98 = vmatpush1.msra.mxu0 0.0
    %99 = vmatprep.subr.mxu0 0.0
    %100 = vmatpush1.msra.mxu0 0.0
    %101 = vmatprep.subr.mxu0 0.0
    %102 = vmatpush1.msra.mxu0 0.0
    %103 = vmatprep.subr.mxu0 0.0
    %104 = vmatpush1.msra.mxu0 0.0
    %105 = vmatprep.subr.mxu0 0.0
    %106 = vmatpush1.msra.mxu0 0.0
    %107 = vmatprep.subr.mxu0 0.0
    %108 = vmatpush1.msra.mxu0 0.0
    %109 = vmatprep.subr.mxu0 0.0
    %110 = vmatpush1.msra.mxu0 0.0
    %111 = vmatprep.subr.mxu0 0.0
    %112 = vmatpush1.msra.mxu0 0.0
    %113 = vmatprep.subr.mxu0 0.0
    %114 = vmatpush1.msra.mxu0 0.0
    %115 = vmatprep.subr.mxu0 0.0
    %116 = vmatpush1.msra.mxu0 0.0
    %117 = vmatprep.subr.mxu0 0.0
    %118 = vmatpush1.msra.mxu0 0.0
    %119 = vmatprep.mubr.f32.mxu0 0.0
    %120 = vmatmul.mubr.f32.gmra.mrb[0].mxu0 %v53
    %v121 = vpop.f32.mrb[0].mxu0
    %v122 = vadd.f32 %v50, %v121
    %v123 = vpop.f32.mrb[0].mxu0
    %124 = vdwg.mxu0
    %v126 = vsel %vm51, %v18, 0
    %v129 = vsel %vm51, %v19, 0
    %v132 = vsel %vm51, %v20, 0
    %v135 = vsel %vm51, %v21, 0
    %v138 = vsel %vm51, %v22, 0
    %v141 = vsel %vm51, %v23, 0
    %v144 = vsel %vm51, %v24, 0
    %v147 = vsel %vm51, %v25, 0
    %149 = vmatprep.subr.mxu0 0.0
    %150 = vmatpush1.msra.mxu0 %v26
    %151 = vmatprep.subr.mxu0 0.0
    %152 = vmatpush1.msra.mxu0 %v27
    %153 = vmatprep.subr.mxu0 0.0
    %154 = vmatpush1.msra.mxu0 %v28
    %155 = vmatprep.subr.mxu0 0.0
    %156 = vmatpush1.msra.mxu0 %v29
    %157 = vmatprep.subr.mxu0 0.0
    %158 = vmatpush1.msra.mxu0 0.0
    %159 = vmatprep.subr.mxu0 0.0
    %160 = vmatpush1.msra.mxu0 0.0
    %161 = vmatprep.subr.mxu0 0.0
    %162 = vmatpush1.msra.mxu0 0.0
    %163 = vmatprep.subr.mxu0 0.0
    %164 = vmatpush1.msra.mxu0 0.0
    %165 = vmatprep.subr.mxu0 0.0
    %166 = vmatpush1.msra.mxu0 0.0
    %167 = vmatprep.subr.mxu0 0.0
    %168 = vmatpush1.msra.mxu0 0.0
    %169 = vmatprep.subr.mxu0 0.0
    %170 = vmatpush1.msra.mxu0 0.0
    %171 = vmatprep.subr.mxu0 0.0
    %172 = vmatpush1.msra.mxu0 0.0
    %173 = vmatprep.subr.mxu0 0.0
    %174 = vmatpush1.msra.mxu0 0.0
    %175 = vmatprep.subr.mxu0 0.0
    %176 = vmatpush1.msra.mxu0 0.0
    %177 = vmatprep.subr.mxu0 0.0
    %178 = vmatpush1.msra.mxu0 0.0
    %179 = vmatprep.subr.mxu0 0.0
    %180 = vmatpush1.msra.mxu0 0.0
    %181 = vmatprep.subr.mxu0 0.0
    %182 = vmatpush1.msra.mxu0 0.0
    %183 = vmatprep.subr.mxu0 0.0
    %184 = vmatpush1.msra.mxu0 0.0
    %185 = vmatprep.subr.mxu0 0.0
    %186 = vmatpush1.msra.mxu0 0.0
    %187 = vmatprep.subr.mxu0 0.0
    %188 = vmatpush1.msra.mxu0 0.0
    %189 = vmatprep.subr.mxu0 0.0
    %190 = vmatpush1.msra.mxu0 0.0
    %191 = vmatprep.subr.mxu0 0.0
    %192 = vmatpush1.msra.mxu0 0.0
    %193 = vmatprep.subr.mxu0 0.0
    %194 = vmatpush1.msra.mxu0 0.0
    %195 = vmatprep.subr.mxu0 0.0
    %196 = vmatpush1.msra.mxu0 0.0
    %197 = vmatprep.subr.mxu0 0.0
    %198 = vmatpush1.msra.mxu0 0.0
    %199 = vmatprep.subr.mxu0 0.0
    %200 = vmatpush1.msra.mxu0 0.0
    %201 = vmatprep.subr.mxu0 0.0
    %202 = vmatpush1.msra.mxu0 0.0
    %203 = vmatprep.subr.mxu0 0.0
    %204 = vmatpush1.msra.mxu0 0.0
    %205 = vmatprep.subr.mxu0 0.0
    %206 = vmatpush1.msra.mxu0 0.0
    %207 = vmatprep.subr.mxu0 0.0
    %208 = vmatpush1.msra.mxu0 0.0
    %209 = vmatprep.subr.mxu0 0.0
    %210 = vmatpush1.msra.mxu0 0.0
    %211 = vmatprep.subr.mxu0 0.0
    %212 = vmatpush1.msra.mxu0 0.0
    %213 = vmatprep.mubr.f32.mxu0 0.0
    %214 = vmatmul.mubr.f32.gmra.mrb[0].mxu0 %v126
    %v215 = vpop.f32.mrb[0].mxu0
    %v216 = vadd.f32 0.0, %v215
    %v217 = vpop.f32.mrb[0].mxu0
    %218 = vmatprep.mubr.f32.mxu0 0.0
    %219 = vmatmul.mubr.f32.gmra.mrb[0].mxu0 %v129
    %v220 = vpop.f32.mrb[0].mxu0
    %v221 = vadd.f32 0.0, %v220
    %v222 = vpop.f32.mrb[0].mxu0
    %223 = vmatprep.mubr.f32.mxu0 0.0
    %224 = vmatmul.mubr.f32.gmra.mrb[0].mxu0 %v132
    %v225 = vpop.f32.mrb[0].mxu0
    %v226 = vadd.f32 0.0, %v225
    %v227 = vpop.f32.mrb[0].mxu0
    %228 = vmatprep.mubr.f32.mxu0 0.0
    %229 = vmatmul.mubr.f32.gmra.mrb[0].mxu0 %v135
    %v230 = vpop.f32.mrb[0].mxu0
    %v231 = vadd.f32 0.0, %v230
    %v232 = vpop.f32.mrb[0].mxu0
    %233 = vmatprep.mubr.f32.mxu0 0.0
    %234 = vmatmul.mubr.f32.gmra.mrb[0].mxu0 %v138
    %v235 = vpop.f32.mrb[0].mxu0
    %v236 = vadd.f32 0.0, %v235
    %v237 = vpop.f32.mrb[0].mxu0
    %238 = vmatprep.mubr.f32.mxu0 0.0
    %239 = vmatmul.mubr.f32.gmra.mrb[0].mxu0 %v141
    %v240 = vpop.f32.mrb[0].mxu0
    %v241 = vadd.f32 0.0, %v240
    %v242 = vpop.f32.mrb[0].mxu0
    %243 = vmatprep.mubr.f32.mxu0 0.0
    %244 = vmatmul.mubr.f32.gmra.mrb[0].mxu0 %v144
    %v245 = vpop.f32.mrb[0].mxu0
    %v246 = vadd.f32 0.0, %v245
    %v247 = vpop.f32.mrb[0].mxu0
    %248 = vmatprep.mubr.f32.mxu0 0.0
    %249 = vmatmul.mubr.f32.gmra.mrb[0].mxu0 %v147
    %v250 = vpop.f32.mrb[0].mxu0
    %v251 = vadd.f32 0.0, %v250
    %v252 = vpop.f32.mrb[0].mxu0
    %253 = vdwg.mxu0
    %v255 = vcombine.high %v122, %v122
    %v257 = vunpack.c.l.s4 1966171168
    %v258 = vunpack.c.0.s8 %v257
    %v259 = vlaneseq
    %v260 = vshrl.u32 %v259, 7
    %v261 = vsub.s32 %v258, %v260
    %v262 = vrot.slane %v122, %v261
    %v264 = vunpack.c.l.s4 1966171168
    %v265 = vunpack.c.0.s8 %v264
    %v266 = vlaneseq
    %v267 = vshrl.u32 %v266, 7
    %v268 = vsub.s32 %v265, %v267
    %v269 = vrot.slane %v255, %v268
    %v270 = vcombine.high %v262, %v262
    %v271 = vcombine.high %v269, %v269
    %v273 = vunpack.c.l.s4 1966171168
    %v274 = vunpack.c.0.s8 %v273
    %v275 = vlaneseq
    %v276 = vshrl.u32 %v275, 7
    %v277 = vsub.s32 %v274, %v276
    %v278 = vrot.slane %v262, %v277
    %v280 = vunpack.c.l.s4 1966171168
    %v281 = vunpack.c.0.s8 %v280
    %v282 = vlaneseq
    %v283 = vshrl.u32 %v282, 7
    %v284 = vsub.s32 %v281, %v283
    %v285 = vrot.slane %v269, %v284
    %v287 = vunpack.c.l.s4 1966171168
    %v288 = vunpack.c.0.s8 %v287
    %v289 = vlaneseq
    %v290 = vshrl.u32 %v289, 7
    %v291 = vsub.s32 %v288, %v290
    %v292 = vrot.slane %v270, %v291
    %v294 = vunpack.c.l.s4 1966171168
    %v295 = vunpack.c.0.s8 %v294
    %v296 = vlaneseq
    %v297 = vshrl.u32 %v296, 7
    %v298 = vsub.s32 %v295, %v297
    %v299 = vrot.slane %v271, %v298
    %v300 = vcombine.high %v278, %v278
    %v301 = vcombine.high %v285, %v285
    %v302 = vcombine.high %v292, %v292
    %v303 = vcombine.high %v299, %v299
    %v304 = vlaneseq
    %v305 = vshrl.u32 %v304, 7
    %v306 = vsub.s32 0, %v305
    %v307 = vrot.slane %v278, %v306
    %v308 = vlaneseq
    %v309 = vshrl.u32 %v308, 7
    %v310 = vsub.s32 0, %v309
    %v311 = vrot.slane %v292, %v310
    %v312 = vlaneseq
    %v313 = vshrl.u32 %v312, 7
    %v314 = vsub.s32 0, %v313
    %v315 = vrot.slane %v300, %v314
    %v316 = vlaneseq
    %v317 = vshrl.u32 %v316, 7
    %v318 = vsub.s32 0, %v317
    %v319 = vrot.slane %v302, %v318
    %v320 = vlaneseq
    %v321 = vshrl.u32 %v320, 7
    %v322 = vsub.s32 0, %v321
    %v323 = vrot.slane %v285, %v322
    %v324 = vlaneseq
    %v325 = vshrl.u32 %v324, 7
    %v326 = vsub.s32 0, %v325
    %v327 = vrot.slane %v299, %v326
    %v328 = vlaneseq
    %v329 = vshrl.u32 %v328, 7
    %v330 = vsub.s32 0, %v329
    %v331 = vrot.slane %v301, %v330
    %v332 = vlaneseq
    %v333 = vshrl.u32 %v332, 7
    %v334 = vsub.s32 0, %v333
    %v335 = vrot.slane %v303, %v334
    %v344 = vadd.f32 %v216, %v307
    %v345 = vadd.f32 %v221, %v311
    %v346 = vadd.f32 %v226, %v315
    %v347 = vadd.f32 %v231, %v319
    %v348 = vadd.f32 %v236, %v323
    %v349 = vadd.f32 %v241, %v327
    %v350 = vadd.f32 %v246, %v331
    %v351 = vadd.f32 %v251, %v335
    %v352 = vtanh.pop %v344
    %v353 = vtanh.pop %v345
    %v354 = vtanh.pop %v346
    %v355 = vtanh.pop %v347
    %v356 = vtanh.pop %v348
    %v357 = vtanh.pop %v349
    %v358 = vtanh.pop %v350
    %v359 = vtanh.pop %v351
    %v360 = vlaneseq
    %v361 = vshrl.u32 %v360, 7
    %v362 = vsub.s32 0, %v361
    %v363 = vrot.slane %v43, %v362
    %v365 = vsel %vm51, %v352, 0
    %v368 = vsel %vm51, %v353, 0
    %v371 = vsel %vm51, %v354, 0
    %v374 = vsel %vm51, %v355, 0
    %v377 = vsel %vm51, %v356, 0
    %v380 = vsel %vm51, %v357, 0
    %v383 = vsel %vm51, %v358, 0
    %v386 = vsel %vm51, %v359, 0
    %388 = vmatprep.subr.mxu0 0.0
    %389 = vmatpush1.msra.mxu0 %v34
    %390 = vmatprep.subr.mxu0 0.0
    %391 = vmatpush1.msra.mxu0 %v35
    %392 = vmatprep.subr.mxu0 0.0
    %393 = vmatpush1.msra.mxu0 %v36
    %394 = vmatprep.subr.mxu0 0.0
    %395 = vmatpush1.msra.mxu0 %v37
    %396 = vmatprep.subr.mxu0 0.0
    %397 = vmatpush1.msra.mxu0 0.0
    %398 = vmatprep.subr.mxu0 0.0
    %399 = vmatpush1.msra.mxu0 0.0
    %400 = vmatprep.subr.mxu0 0.0
    %401 = vmatpush1.msra.mxu0 0.0
    %402 = vmatprep.subr.mxu0 0.0
    %403 = vmatpush1.msra.mxu0 0.0
    %404 = vmatprep.subr.mxu0 0.0
    %405 = vmatpush1.msra.mxu0 0.0
    %406 = vmatprep.subr.mxu0 0.0
    %407 = vmatpush1.msra.mxu0 0.0
    %408 = vmatprep.subr.mxu0 0.0
    %409 = vmatpush1.msra.mxu0 0.0
    %410 = vmatprep.subr.mxu0 0.0
    %411 = vmatpush1.msra.mxu0 0.0
    %412 = vmatprep.subr.mxu0 0.0
    %413 = vmatpush1.msra.mxu0 0.0
    %414 = vmatprep.subr.mxu0 0.0
    %415 = vmatpush1.msra.mxu0 0.0
    %416 = vmatprep.subr.mxu0 0.0
    %417 = vmatpush1.msra.mxu0 0.0
    %418 = vmatprep.subr.mxu0 0.0
    %419 = vmatpush1.msra.mxu0 0.0
    %420 = vmatprep.subr.mxu0 0.0
    %421 = vmatpush1.msra.mxu0 0.0
    %422 = vmatprep.subr.mxu0 0.0
    %423 = vmatpush1.msra.mxu0 0.0
    %424 = vmatprep.subr.mxu0 0.0
    %425 = vmatpush1.msra.mxu0 0.0
    %426 = vmatprep.subr.mxu0 0.0
    %427 = vmatpush1.msra.mxu0 0.0
    %428 = vmatprep.subr.mxu0 0.0
    %429 = vmatpush1.msra.mxu0 0.0
    %430 = vmatprep.subr.mxu0 0.0
    %431 = vmatpush1.msra.mxu0 0.0
    %432 = vmatprep.subr.mxu0 0.0
    %433 = vmatpush1.msra.mxu0 0.0
    %434 = vmatprep.subr.mxu0 0.0
    %435 = vmatpush1.msra.mxu0 0.0
    %436 = vmatprep.subr.mxu0 0.0
    %437 = vmatpush1.msra.mxu0 0.0
    %438 = vmatprep.subr.mxu0 0.0
    %439 = vmatpush1.msra.mxu0 0.0
    %440 = vmatprep.subr.mxu0 0.0
    %441 = vmatpush1.msra.mxu0 0.0
    %442 = vmatprep.subr.mxu0 0.0
    %443 = vmatpush1.msra.mxu0 0.0
    %444 = vmatprep.subr.mxu0 0.0
    %445 = vmatpush1.msra.mxu0 0.0
    %446 = vmatprep.subr.mxu0 0.0
    %447 = vmatpush1.msra.mxu0 0.0
    %448 = vmatprep.subr.mxu0 0.0
    %449 = vmatpush1.msra.mxu0 0.0
    %450 = vmatprep.subr.mxu0 0.0
    %451 = vmatpush1.msra.mxu0 0.0
    %452 = vmatprep.mubr.f32.mxu0 0.0
    %453 = vmatmul.mubr.f32.gmra.mrb[0].mxu0 %v365
    %v454 = vpop.f32.mrb[0].mxu0
    %v455 = vadd.f32 %v363, %v454
    %v456 = vpop.f32.mrb[0].mxu0
    %457 = vmatprep.mubr.f32.mxu0 0.0
    %458 = vmatmul.mubr.f32.gmra.mrb[0].mxu0 %v368
    %v459 = vpop.f32.mrb[0].mxu0
    %v460 = vadd.f32 %v363, %v459
    %v461 = vpop.f32.mrb[0].mxu0
    %462 = vmatprep.mubr.f32.mxu0 0.0
    %463 = vmatmul.mubr.f32.gmra.mrb[0].mxu0 %v371
    %v464 = vpop.f32.mrb[0].mxu0
    %v465 = vadd.f32 %v363, %v464
    %v466 = vpop.f32.mrb[0].mxu0
    %467 = vmatprep.mubr.f32.mxu0 0.0
    %468 = vmatmul.mubr.f32.gmra.mrb[0].mxu0 %v374
    %v469 = vpop.f32.mrb[0].mxu0
    %v470 = vadd.f32 %v363, %v469
    %v471 = vpop.f32.mrb[0].mxu0
    %472 = vmatprep.mubr.f32.mxu0 0.0
    %473 = vmatmul.mubr.f32.gmra.mrb[0].mxu0 %v377
    %v474 = vpop.f32.mrb[0].mxu0
    %v475 = vadd.f32 %v363, %v474
    %v476 = vpop.f32.mrb[0].mxu0
    %477 = vmatprep.mubr.f32.mxu0 0.0
    %478 = vmatmul.mubr.f32.gmra.mrb[0].mxu0 %v380
    %v479 = vpop.f32.mrb[0].mxu0
    %v480 = vadd.f32 %v363, %v479
    %v481 = vpop.f32.mrb[0].mxu0
    %482 = vmatprep.mubr.f32.mxu0 0.0
    %483 = vmatmul.mubr.f32.gmra.mrb[0].mxu0 %v383
    %v484 = vpop.f32.mrb[0].mxu0
    %v485 = vadd.f32 %v363, %v484
    %v486 = vpop.f32.mrb[0].mxu0
    %487 = vmatprep.mubr.f32.mxu0 0.0
    %488 = vmatmul.mubr.f32.gmra.mrb[0].mxu0 %v386
    %v489 = vpop.f32.mrb[0].mxu0
    %v490 = vadd.f32 %v363, %v489
    %v491 = vpop.f32.mrb[0].mxu0
    %492 = vdwg.mxu0
    %v493 = vtanh.pop %v455
    %v494 = vtanh.pop %v460
    %v495 = vtanh.pop %v465
    %v496 = vtanh.pop %v470
    %v497 = vtanh.pop %v475
    %v498 = vtanh.pop %v480
    %v499 = vtanh.pop %v485
    %v500 = vtanh.pop %v490
    %v501 = vlaneseq
    %v502 = vshrl.u32 %v501, 7
    %v503 = vsub.s32 0, %v502
    %v504 = vrot.slane %v44, %v503
    %v506 = vsel %vm51, %v493, 0
    %v509 = vsel %vm51, %v494, 0
    %v512 = vsel %vm51, %v495, 0
    %v515 = vsel %vm51, %v496, 0
    %v518 = vsel %vm51, %v497, 0
    %v521 = vsel %vm51, %v498, 0
    %v524 = vsel %vm51, %v499, 0
    %v527 = vsel %vm51, %v500, 0
    %529 = vmatprep.subr.mxu0 0.0
    %530 = vmatpush1.msra.mxu0 %v38
    %531 = vmatprep.subr.mxu0 0.0
    %532 = vmatpush1.msra.mxu0 %v39
    %533 = vmatprep.subr.mxu0 0.0
    %534 = vmatpush1.msra.mxu0 %v40
    %535 = vmatprep.subr.mxu0 0.0
    %536 = vmatpush1.msra.mxu0 %v41
    %537 = vmatprep.subr.mxu0 0.0
    %538 = vmatpush1.msra.mxu0 0.0
    %539 = vmatprep.subr.mxu0 0.0
    %540 = vmatpush1.msra.mxu0 0.0
    %541 = vmatprep.subr.mxu0 0.0
    %542 = vmatpush1.msra.mxu0 0.0
    %543 = vmatprep.subr.mxu0 0.0
    %544 = vmatpush1.msra.mxu0 0.0
    %545 = vmatprep.subr.mxu0 0.0
    %546 = vmatpush1.msra.mxu0 0.0
    %547 = vmatprep.subr.mxu0 0.0
    %548 = vmatpush1.msra.mxu0 0.0
    %549 = vmatprep.subr.mxu0 0.0
    %550 = vmatpush1.msra.mxu0 0.0
    %551 = vmatprep.subr.mxu0 0.0
    %552 = vmatpush1.msra.mxu0 0.0
    %553 = vmatprep.subr.mxu0 0.0
    %554 = vmatpush1.msra.mxu0 0.0
    %555 = vmatprep.subr.mxu0 0.0
    %556 = vmatpush1.msra.mxu0 0.0
    %557 = vmatprep.subr.mxu0 0.0
    %558 = vmatpush1.msra.mxu0 0.0
    %559 = vmatprep.subr.mxu0 0.0
    %560 = vmatpush1.msra.mxu0 0.0
    %561 = vmatprep.subr.mxu0 0.0
    %562 = vmatpush1.msra.mxu0 0.0
    %563 = vmatprep.subr.mxu0 0.0
    %564 = vmatpush1.msra.mxu0 0.0
    %565 = vmatprep.subr.mxu0 0.0
    %566 = vmatpush1.msra.mxu0 0.0
    %567 = vmatprep.subr.mxu0 0.0
    %568 = vmatpush1.msra.mxu0 0.0
    %569 = vmatprep.subr.mxu0 0.0
    %570 = vmatpush1.msra.mxu0 0.0
    %571 = vmatprep.subr.mxu0 0.0
    %572 = vmatpush1.msra.mxu0 0.0
    %573 = vmatprep.subr.mxu0 0.0
    %574 = vmatpush1.msra.mxu0 0.0
    %575 = vmatprep.subr.mxu0 0.0
    %576 = vmatpush1.msra.mxu0 0.0
    %577 = vmatprep.subr.mxu0 0.0
    %578 = vmatpush1.msra.mxu0 0.0
    %579 = vmatprep.subr.mxu0 0.0
    %580 = vmatpush1.msra.mxu0 0.0
    %581 = vmatprep.subr.mxu0 0.0
    %582 = vmatpush1.msra.mxu0 0.0
    %583 = vmatprep.subr.mxu0 0.0
    %584 = vmatpush1.msra.mxu0 0.0
    %585 = vmatprep.subr.mxu0 0.0
    %586 = vmatpush1.msra.mxu0 0.0
    %587 = vmatprep.subr.mxu0 0.0
    %588 = vmatpush1.msra.mxu0 0.0
    %589 = vmatprep.subr.mxu0 0.0
    %590 = vmatpush1.msra.mxu0 0.0
    %591 = vmatprep.subr.mxu0 0.0
    %592 = vmatpush1.msra.mxu0 0.0
    %593 = vmatprep.mubr.f32.mxu0 0.0
    %594 = vmatmul.mubr.f32.gmra.mrb[0].mxu0 %v506
    %v595 = vpop.f32.mrb[0].mxu0
    %v596 = vadd.f32 %v504, %v595
    %v597 = vpop.f32.mrb[0].mxu0
    %598 = vmatprep.mubr.f32.mxu0 0.0
    %599 = vmatmul.mubr.f32.gmra.mrb[0].mxu0 %v509
    %v600 = vpop.f32.mrb[0].mxu0
    %v601 = vadd.f32 %v504, %v600
    %v602 = vpop.f32.mrb[0].mxu0
    %603 = vmatprep.mubr.f32.mxu0 0.0
    %604 = vmatmul.mubr.f32.gmra.mrb[0].mxu0 %v512
    %v605 = vpop.f32.mrb[0].mxu0
    %v606 = vadd.f32 %v504, %v605
    %v607 = vpop.f32.mrb[0].mxu0
    %608 = vmatprep.mubr.f32.mxu0 0.0
    %609 = vmatmul.mubr.f32.gmra.mrb[0].mxu0 %v515
    %v610 = vpop.f32.mrb[0].mxu0
    %v611 = vadd.f32 %v504, %v610
    %v612 = vpop.f32.mrb[0].mxu0
    %613 = vmatprep.mubr.f32.mxu0 0.0
    %614 = vmatmul.mubr.f32.gmra.mrb[0].mxu0 %v518
    %v615 = vpop.f32.mrb[0].mxu0
    %v616 = vadd.f32 %v504, %v615
    %v617 = vpop.f32.mrb[0].mxu0
    %618 = vmatprep.mubr.f32.mxu0 0.0
    %619 = vmatmul.mubr.f32.gmra.mrb[0].mxu0 %v521
    %v620 = vpop.f32.mrb[0].mxu0
    %v621 = vadd.f32 %v504, %v620
    %v622 = vpop.f32.mrb[0].mxu0
    %623 = vmatprep.mubr.f32.mxu0 0.0
    %624 = vmatmul.mubr.f32.gmra.mrb[0].mxu0 %v524
    %v625 = vpop.f32.mrb[0].mxu0
    %v626 = vadd.f32 %v504, %v625
    %v627 = vpop.f32.mrb[0].mxu0
    %628 = vmatprep.mubr.f32.mxu0 0.0
    %629 = vmatmul.mubr.f32.gmra.mrb[0].mxu0 %v527
    %v630 = vpop.f32.mrb[0].mxu0
    %v631 = vadd.f32 %v504, %v630
    %v632 = vpop.f32.mrb[0].mxu0
    %633 = vdwg.mxu0
    %v634 = vtanh.pop %v596
    %v635 = vtanh.pop %v601
    %v636 = vtanh.pop %v606
    %v637 = vtanh.pop %v611
    %v638 = vtanh.pop %v616
    %v639 = vtanh.pop %v621
    %v640 = vtanh.pop %v626
    %v641 = vtanh.pop %v631
    %v642 = vlaneseq
    %v643 = vshrl.u32 %v642, 7
    %v644 = vsub.s32 0, %v643
    %v645 = vrot.slane %v45, %v644
    %v646 = vmul.f32 %v634, %v645
    %v647 = vmul.f32 %v635, %v645
    %v648 = vmul.f32 %v636, %v645
    %v649 = vmul.f32 %v637, %v645
    %v650 = vmul.f32 %v638, %v645
    %v651 = vmul.f32 %v639, %v645
    %v652 = vmul.f32 %v640, %v645
    %v653 = vmul.f32 %v641, %v645
    %v654 = vsel %vm51, %v646, 0.0
    %655 = vadd.xlane.f32.xlu0 %v654
    %v656 = vpop.xlane.xlu0 %655
    %v657 = vsel %vm51, %v647, 0.0
    %658 = vadd.xlane.f32.xlu0 %v657
    %v659 = vpop.xlane.xlu0 %658
    %v660 = vsel %vm51, %v648, 0.0
    %661 = vadd.xlane.f32.xlu0 %v660
    %v662 = vpop.xlane.xlu0 %661
    %v663 = vsel %vm51, %v649, 0.0
    %664 = vadd.xlane.f32.xlu0 %v663
    %v665 = vpop.xlane.xlu0 %664
    %v666 = vsel %vm51, %v650, 0.0
    %667 = vadd.xlane.f32.xlu0 %v666
    %v668 = vpop.xlane.xlu0 %667
    %v669 = vsel %vm51, %v651, 0.0
    %670 = vadd.xlane.f32.xlu0 %v669
    %v671 = vpop.xlane.xlu0 %670
    %v672 = vsel %vm51, %v652, 0.0
    %673 = vadd.xlane.f32.xlu0 %v672
    %v674 = vpop.xlane.xlu0 %673
    %v675 = vsel %vm51, %v653, 0.0
    %676 = vadd.xlane.f32.xlu0 %v675
    %v677 = vpop.xlane.xlu0 %676
    %v686 = vlaneseq
    %v687 = vand.u32 %v686, 127
    %v688 = vlaneseq
    %v689 = vshrl.u32 %v688, 7
    %v690 = vsub.s32 %v687, %v689
    %v691 = vrot.slane %v656, %v690
    %v692 = vlaneseq
    %v693 = vshrl.u32 %v692, 7
    %v694 = vsub.s32 %v687, %v693
    %v695 = vrot.slane %v659, %v694
    %v696 = vlaneseq
    %v697 = vshrl.u32 %v696, 7
    %v698 = vsub.s32 %v687, %v697
    %v699 = vrot.slane %v662, %v698
    %v700 = vlaneseq
    %v701 = vshrl.u32 %v700, 7
    %v702 = vsub.s32 %v687, %v701
    %v703 = vrot.slane %v665, %v702
    %v704 = vlaneseq
    %v705 = vshrl.u32 %v704, 7
    %v706 = vsub.s32 %v687, %v705
    %v707 = vrot.slane %v668, %v706
    %v708 = vlaneseq
    %v709 = vshrl.u32 %v708, 7
    %v710 = vsub.s32 %v687, %v709
    %v711 = vrot.slane %v671, %v710
    %v712 = vlaneseq
    %v713 = vshrl.u32 %v712, 7
    %v714 = vsub.s32 %v687, %v713
    %v715 = vrot.slane %v674, %v714
    %v716 = vlaneseq
    %v717 = vshrl.u32 %v716, 7
    %v718 = vsub.s32 %v687, %v717
    %v719 = vrot.slane %v677, %v718
    %vm720 = vcmask 1041409
    %v721 = vsel %vm720, %v695, %v691
    %vm722 = vcmask 1042434
    %v723 = vsel %vm722, %v699, %v721
    %vm724 = vcmask 1043459
    %v725 = vsel %vm724, %v703, %v723
    %vm726 = vcmask 1044484
    %v727 = vsel %vm726, %v707, %v725
    %vm728 = vcmask 1045509
    %v729 = vsel %vm728, %v711, %v727
    %vm730 = vcmask 1046534
    %v731 = vsel %vm730, %v715, %v729
    %vm732 = vcmask 1047559
    %v733 = vsel %vm732, %v719, %v731
    %vm735 = vcmask 64512
    %v736 = vsel %vm735, %v733, -inf
    %737 = vmax.xlane.f32.xlu0 %v736
    %v738 = vpop.xlane.xlu0 %737
    %v740 = vlaneseq
    %v741 = vshrl.u32 %v740, 7
    %v742 = vsub.s32 0, %v741
    %v743 = vrot.slane %v738, %v742
    %v744 = vlaneseq
    %v745 = vshrl.u32 %v744, 7
    %v746 = vsub.s32 1, %v745
    %v747 = vrot.slane %v738, %v746
    %v748 = vlaneseq
    %v749 = vshrl.u32 %v748, 7
    %v750 = vsub.s32 2, %v749
    %v751 = vrot.slane %v738, %v750
    %v752 = vlaneseq
    %v753 = vshrl.u32 %v752, 7
    %v754 = vsub.s32 3, %v753
    %v755 = vrot.slane %v738, %v754
    %v756 = vlaneseq
    %v757 = vshrl.u32 %v756, 7
    %v758 = vsub.s32 4, %v757
    %v759 = vrot.slane %v738, %v758
    %v760 = vlaneseq
    %v761 = vshrl.u32 %v760, 7
    %v762 = vsub.s32 5, %v761
    %v763 = vrot.slane %v738, %v762
    %v764 = vlaneseq
    %v765 = vshrl.u32 %v764, 7
    %v766 = vsub.s32 6, %v765
    %v767 = vrot.slane %v738, %v766
    %v768 = vlaneseq
    %v769 = vshrl.u32 %v768, 7
    %v770 = vsub.s32 7, %v769
    %v771 = vrot.slane %v738, %v770
    %v780 = vsub.f32 %v656, %v743
    %v781 = vsub.f32 %v659, %v747
    %v782 = vsub.f32 %v662, %v751
    %v783 = vsub.f32 %v665, %v755
    %v784 = vsub.f32 %v668, %v759
    %v785 = vsub.f32 %v671, %v763
    %v786 = vsub.f32 %v674, %v767
    %v787 = vsub.f32 %v677, %v771
    %v788 = vmul.f32 %v780, 1.442695
    %v789 = vpow.pop %v788
    %v790 = vmul.f32 %v781, 1.442695
    %v791 = vpow.pop %v790
    %v792 = vmul.f32 %v782, 1.442695
    %v793 = vpow.pop %v792
    %v794 = vmul.f32 %v783, 1.442695
    %v795 = vpow.pop %v794
    %v796 = vmul.f32 %v784, 1.442695
    %v797 = vpow.pop %v796
    %v798 = vmul.f32 %v785, 1.442695
    %v799 = vpow.pop %v798
    %v800 = vmul.f32 %v786, 1.442695
    %v801 = vpow.pop %v800
    %v802 = vmul.f32 %v787, 1.442695
    %v803 = vpow.pop %v802
    %812 = vset.pattern.permute.xlu0 0
    %813 = vperm.xlu0 %812, %v789
    %v814 = vpop.permute.xlu0 %813
    %815 = vset.pattern.permute.xlu0 0
    %816 = vperm.xlu0 %815, %v791
    %v817 = vpop.permute.xlu0 %816
    %818 = vset.pattern.permute.xlu0 0
    %819 = vperm.xlu0 %818, %v793
    %v820 = vpop.permute.xlu0 %819
    %821 = vset.pattern.permute.xlu0 0
    %822 = vperm.xlu0 %821, %v795
    %v823 = vpop.permute.xlu0 %822
    %824 = vset.pattern.permute.xlu0 0
    %825 = vperm.xlu0 %824, %v797
    %v826 = vpop.permute.xlu0 %825
    %827 = vset.pattern.permute.xlu0 0
    %828 = vperm.xlu0 %827, %v799
    %v829 = vpop.permute.xlu0 %828
    %830 = vset.pattern.permute.xlu0 0
    %831 = vperm.xlu0 %830, %v801
    %v832 = vpop.permute.xlu0 %831
    %833 = vset.pattern.permute.xlu0 0
    %834 = vperm.xlu0 %833, %v803
    %v835 = vpop.permute.xlu0 %834
    %v836 = vlaneseq
    %v837 = vshrl.u32 %v836, 7
    %v838 = vsub.s32 %v687, %v837
    %v839 = vrot.slane %v814, %v838
    %v840 = vlaneseq
    %v841 = vshrl.u32 %v840, 7
    %v842 = vsub.s32 %v687, %v841
    %v843 = vrot.slane %v817, %v842
    %v844 = vlaneseq
    %v845 = vshrl.u32 %v844, 7
    %v846 = vsub.s32 %v687, %v845
    %v847 = vrot.slane %v820, %v846
    %v848 = vlaneseq
    %v849 = vshrl.u32 %v848, 7
    %v850 = vsub.s32 %v687, %v849
    %v851 = vrot.slane %v823, %v850
    %v852 = vlaneseq
    %v853 = vshrl.u32 %v852, 7
    %v854 = vsub.s32 %v687, %v853
    %v855 = vrot.slane %v826, %v854
    %v856 = vlaneseq
    %v857 = vshrl.u32 %v856, 7
    %v858 = vsub.s32 %v687, %v857
    %v859 = vrot.slane %v829, %v858
    %v860 = vlaneseq
    %v861 = vshrl.u32 %v860, 7
    %v862 = vsub.s32 %v687, %v861
    %v863 = vrot.slane %v832, %v862
    %v864 = vlaneseq
    %v865 = vshrl.u32 %v864, 7
    %v866 = vsub.s32 %v687, %v865
    %v867 = vrot.slane %v835, %v866
    %v868 = vsel %vm720, %v843, %v839
    %v869 = vsel %vm722, %v847, %v868
    %v870 = vsel %vm724, %v851, %v869
    %v871 = vsel %vm726, %v855, %v870
    %v872 = vsel %vm728, %v859, %v871
    %v873 = vsel %vm730, %v863, %v872
    %v874 = vsel %vm732, %v867, %v873
    %v876 = vsel %vm735, %v874, 0.0
    %877 = vadd.xlane.f32.xlu0 %v876
    %v878 = vpop.xlane.xlu0 %877
    %v879 = vlaneseq
    %v880 = vshrl.u32 %v879, 7
    %v881 = vsub.s32 0, %v880
    %v882 = vrot.slane %v789, %v881
    %v883 = vlaneseq
    %v884 = vshrl.u32 %v883, 7
    %v885 = vsub.s32 0, %v884
    %v886 = vrot.slane %v791, %v885
    %v887 = vlaneseq
    %v888 = vshrl.u32 %v887, 7
    %v889 = vsub.s32 0, %v888
    %v890 = vrot.slane %v793, %v889
    %v891 = vlaneseq
    %v892 = vshrl.u32 %v891, 7
    %v893 = vsub.s32 0, %v892
    %v894 = vrot.slane %v795, %v893
    %v895 = vlaneseq
    %v896 = vshrl.u32 %v895, 7
    %v897 = vsub.s32 0, %v896
    %v898 = vrot.slane %v797, %v897
    %v899 = vlaneseq
    %v900 = vshrl.u32 %v899, 7
    %v901 = vsub.s32 0, %v900
    %v902 = vrot.slane %v799, %v901
    %v903 = vlaneseq
    %v904 = vshrl.u32 %v903, 7
    %v905 = vsub.s32 0, %v904
    %v906 = vrot.slane %v801, %v905
    %v907 = vlaneseq
    %v908 = vshrl.u32 %v907, 7
    %v909 = vsub.s32 0, %v908
    %v910 = vrot.slane %v803, %v909
    %v911 = vlaneseq
    %v912 = vshrl.u32 %v911, 7
    %v913 = vsub.s32 0, %v912
    %v914 = vrot.slane %v18, %v913
    %916 = vbcast.lane.b32.xlu0 %v914, 256
    %v917 = vpop.permute.xlu0 %916
    %s919 = sor.u32 256, 8
    %920 = vbcast.lane.b32.xlu0 %v914, %s919
    %v921 = vpop.permute.xlu0 %920
    %s923 = sor.u32 256, 16
    %924 = vbcast.lane.b32.xlu0 %v914, %s923
    %v925 = vpop.permute.xlu0 %924
    %s927 = sor.u32 256, 24
    %928 = vbcast.lane.b32.xlu0 %v914, %s927
    %v929 = vpop.permute.xlu0 %928
    %v930 = vlaneseq
    %v931 = vshrl.u32 %v930, 7
    %v932 = vsub.s32 0, %v931
    %v933 = vrot.slane %v19, %v932
    %935 = vbcast.lane.b32.xlu0 %v933, 256
    %v936 = vpop.permute.xlu0 %935
    %s938 = sor.u32 256, 8
    %939 = vbcast.lane.b32.xlu0 %v933, %s938
    %v940 = vpop.permute.xlu0 %939
    %s942 = sor.u32 256, 16
    %943 = vbcast.lane.b32.xlu0 %v933, %s942
    %v944 = vpop.permute.xlu0 %943
    %s946 = sor.u32 256, 24
    %947 = vbcast.lane.b32.xlu0 %v933, %s946
    %v948 = vpop.permute.xlu0 %947
    %v949 = vlaneseq
    %v950 = vshrl.u32 %v949, 7
    %v951 = vsub.s32 0, %v950
    %v952 = vrot.slane %v20, %v951
    %954 = vbcast.lane.b32.xlu0 %v952, 256
    %v955 = vpop.permute.xlu0 %954
    %s957 = sor.u32 256, 8
    %958 = vbcast.lane.b32.xlu0 %v952, %s957
    %v959 = vpop.permute.xlu0 %958
    %s961 = sor.u32 256, 16
    %962 = vbcast.lane.b32.xlu0 %v952, %s961
    %v963 = vpop.permute.xlu0 %962
    %s965 = sor.u32 256, 24
    %966 = vbcast.lane.b32.xlu0 %v952, %s965
    %v967 = vpop.permute.xlu0 %966
    %v968 = vlaneseq
    %v969 = vshrl.u32 %v968, 7
    %v970 = vsub.s32 0, %v969
    %v971 = vrot.slane %v21, %v970
    %973 = vbcast.lane.b32.xlu0 %v971, 256
    %v974 = vpop.permute.xlu0 %973
    %s976 = sor.u32 256, 8
    %977 = vbcast.lane.b32.xlu0 %v971, %s976
    %v978 = vpop.permute.xlu0 %977
    %s980 = sor.u32 256, 16
    %981 = vbcast.lane.b32.xlu0 %v971, %s980
    %v982 = vpop.permute.xlu0 %981
    %s984 = sor.u32 256, 24
    %985 = vbcast.lane.b32.xlu0 %v971, %s984
    %v986 = vpop.permute.xlu0 %985
    %v987 = vlaneseq
    %v988 = vshrl.u32 %v987, 7
    %v989 = vsub.s32 0, %v988
    %v990 = vrot.slane %v22, %v989
    %992 = vbcast.lane.b32.xlu0 %v990, 256
    %v993 = vpop.permute.xlu0 %992
    %s995 = sor.u32 256, 8
    %996 = vbcast.lane.b32.xlu0 %v990, %s995
    %v997 = vpop.permute.xlu0 %996
    %s999 = sor.u32 256, 16
    %1000 = vbcast.lane.b32.xlu0 %v990, %s999
    %v1001 = vpop.permute.xlu0 %1000
    %s1003 = sor.u32 256, 24
    %1004 = vbcast.lane.b32.xlu0 %v990, %s1003
    %v1005 = vpop.permute.xlu0 %1004
    %v1006 = vlaneseq
    %v1007 = vshrl.u32 %v1006, 7
    %v1008 = vsub.s32 0, %v1007
    %v1009 = vrot.slane %v23, %v1008
    %1011 = vbcast.lane.b32.xlu0 %v1009, 256
    %v1012 = vpop.permute.xlu0 %1011
    %s1014 = sor.u32 256, 8
    %1015 = vbcast.lane.b32.xlu0 %v1009, %s1014
    %v1016 = vpop.permute.xlu0 %1015
    %s1018 = sor.u32 256, 16
    %1019 = vbcast.lane.b32.xlu0 %v1009, %s1018
    %v1020 = vpop.permute.xlu0 %1019
    %s1022 = sor.u32 256, 24
    %1023 = vbcast.lane.b32.xlu0 %v1009, %s1022
    %v1024 = vpop.permute.xlu0 %1023
    %v1025 = vlaneseq
    %v1026 = vshrl.u32 %v1025, 7
    %v1027 = vsub.s32 0, %v1026
    %v1028 = vrot.slane %v24, %v1027
    %1030 = vbcast.lane.b32.xlu0 %v1028, 256
    %v1031 = vpop.permute.xlu0 %1030
    %s1033 = sor.u32 256, 8
    %1034 = vbcast.lane.b32.xlu0 %v1028, %s1033
    %v1035 = vpop.permute.xlu0 %1034
    %s1037 = sor.u32 256, 16
    %1038 = vbcast.lane.b32.xlu0 %v1028, %s1037
    %v1039 = vpop.permute.xlu0 %1038
    %s1041 = sor.u32 256, 24
    %1042 = vbcast.lane.b32.xlu0 %v1028, %s1041
    %v1043 = vpop.permute.xlu0 %1042
    %v1044 = vlaneseq
    %v1045 = vshrl.u32 %v1044, 7
    %v1046 = vsub.s32 0, %v1045
    %v1047 = vrot.slane %v25, %v1046
    %1049 = vbcast.lane.b32.xlu0 %v1047, 256
    %v1050 = vpop.permute.xlu0 %1049
    %s1052 = sor.u32 256, 8
    %1053 = vbcast.lane.b32.xlu0 %v1047, %s1052
    %v1054 = vpop.permute.xlu0 %1053
    %s1056 = sor.u32 256, 16
    %1057 = vbcast.lane.b32.xlu0 %v1047, %s1056
    %v1058 = vpop.permute.xlu0 %1057
    %s1060 = sor.u32 256, 24
    %1061 = vbcast.lane.b32.xlu0 %v1047, %s1060
    %v1062 = vpop.permute.xlu0 %1061
    %v1095 = vmul.f32 %v882, %v917
    %v1096 = vmul.f32 %v882, %v921
    %v1097 = vmul.f32 %v882, %v925
    %v1098 = vmul.f32 %v882, %v929
    %v1099 = vmul.f32 %v886, %v936
    %v1100 = vmul.f32 %v886, %v940
    %v1101 = vmul.f32 %v886, %v944
    %v1102 = vmul.f32 %v886, %v948
    %v1103 = vmul.f32 %v890, %v955
    %v1104 = vmul.f32 %v890, %v959
    %v1105 = vmul.f32 %v890, %v963
    %v1106 = vmul.f32 %v890, %v967
    %v1107 = vmul.f32 %v894, %v974
    %v1108 = vmul.f32 %v894, %v978
    %v1109 = vmul.f32 %v894, %v982
    %v1110 = vmul.f32 %v894, %v986
    %v1111 = vmul.f32 %v898, %v993
    %v1112 = vmul.f32 %v898, %v997
    %v1113 = vmul.f32 %v898, %v1001
    %v1114 = vmul.f32 %v898, %v1005
    %v1115 = vmul.f32 %v902, %v1012
    %v1116 = vmul.f32 %v902, %v1016
    %v1117 = vmul.f32 %v902, %v1020
    %v1118 = vmul.f32 %v902, %v1024
    %v1119 = vmul.f32 %v906, %v1031
    %v1120 = vmul.f32 %v906, %v1035
    %v1121 = vmul.f32 %v906, %v1039
    %v1122 = vmul.f32 %v906, %v1043
    %v1123 = vmul.f32 %v910, %v1050
    %v1124 = vmul.f32 %v910, %v1054
    %v1125 = vmul.f32 %v910, %v1058
    %v1126 = vmul.f32 %v910, %v1062
    %v1127 = vlaneseq
    %v1128 = vshrl.u32 %v1127, 7
    %v1129 = vsub.s32 1, %v1128
    %v1130 = vrot.slane %v789, %v1129
    %v1131 = vlaneseq
    %v1132 = vshrl.u32 %v1131, 7
    %v1133 = vsub.s32 1, %v1132
    %v1134 = vrot.slane %v791, %v1133
    %v1135 = vlaneseq
    %v1136 = vshrl.u32 %v1135, 7
    %v1137 = vsub.s32 1, %v1136
    %v1138 = vrot.slane %v793, %v1137
    %v1139 = vlaneseq
    %v1140 = vshrl.u32 %v1139, 7
    %v1141 = vsub.s32 1, %v1140
    %v1142 = vrot.slane %v795, %v1141
    %v1143 = vlaneseq
    %v1144 = vshrl.u32 %v1143, 7
    %v1145 = vsub.s32 1, %v1144
    %v1146 = vrot.slane %v797, %v1145
    %v1147 = vlaneseq
    %v1148 = vshrl.u32 %v1147, 7
    %v1149 = vsub.s32 1, %v1148
    %v1150 = vrot.slane %v799, %v1149
    %v1151 = vlaneseq
    %v1152 = vshrl.u32 %v1151, 7
    %v1153 = vsub.s32 1, %v1152
    %v1154 = vrot.slane %v801, %v1153
    %v1155 = vlaneseq
    %v1156 = vshrl.u32 %v1155, 7
    %v1157 = vsub.s32 1, %v1156
    %v1158 = vrot.slane %v803, %v1157
    %v1159 = vlaneseq
    %v1160 = vshrl.u32 %v1159, 7
    %v1161 = vsub.s32 1, %v1160
    %v1162 = vrot.slane %v18, %v1161
    %1164 = vbcast.lane.b32.xlu0 %v1162, 256
    %v1165 = vpop.permute.xlu0 %1164
    %s1167 = sor.u32 256, 8
    %1168 = vbcast.lane.b32.xlu0 %v1162, %s1167
    %v1169 = vpop.permute.xlu0 %1168
    %s1171 = sor.u32 256, 16
    %1172 = vbcast.lane.b32.xlu0 %v1162, %s1171
    %v1173 = vpop.permute.xlu0 %1172
    %s1175 = sor.u32 256, 24
    %1176 = vbcast.lane.b32.xlu0 %v1162, %s1175
    %v1177 = vpop.permute.xlu0 %1176
    %v1178 = vlaneseq
    %v1179 = vshrl.u32 %v1178, 7
    %v1180 = vsub.s32 1, %v1179
    %v1181 = vrot.slane %v19, %v1180
    %1183 = vbcast.lane.b32.xlu0 %v1181, 256
    %v1184 = vpop.permute.xlu0 %1183
    %s1186 = sor.u32 256, 8
    %1187 = vbcast.lane.b32.xlu0 %v1181, %s1186
    %v1188 = vpop.permute.xlu0 %1187
    %s1190 = sor.u32 256, 16
    %1191 = vbcast.lane.b32.xlu0 %v1181, %s1190
    %v1192 = vpop.permute.xlu0 %1191
    %s1194 = sor.u32 256, 24
    %1195 = vbcast.lane.b32.xlu0 %v1181, %s1194
    %v1196 = vpop.permute.xlu0 %1195
    %v1197 = vlaneseq
    %v1198 = vshrl.u32 %v1197, 7
    %v1199 = vsub.s32 1, %v1198
    %v1200 = vrot.slane %v20, %v1199
    %1202 = vbcast.lane.b32.xlu0 %v1200, 256
    %v1203 = vpop.permute.xlu0 %1202
    %s1205 = sor.u32 256, 8
    %1206 = vbcast.lane.b32.xlu0 %v1200, %s1205
    %v1207 = vpop.permute.xlu0 %1206
    %s1209 = sor.u32 256, 16
    %1210 = vbcast.lane.b32.xlu0 %v1200, %s1209
    %v1211 = vpop.permute.xlu0 %1210
    %s1213 = sor.u32 256, 24
    %1214 = vbcast.lane.b32.xlu0 %v1200, %s1213
    %v1215 = vpop.permute.xlu0 %1214
    %v1216 = vlaneseq
    %v1217 = vshrl.u32 %v1216, 7
    %v1218 = vsub.s32 1, %v1217
    %v1219 = vrot.slane %v21, %v1218
    %1221 = vbcast.lane.b32.xlu0 %v1219, 256
    %v1222 = vpop.permute.xlu0 %1221
    %s1224 = sor.u32 256, 8
    %1225 = vbcast.lane.b32.xlu0 %v1219, %s1224
    %v1226 = vpop.permute.xlu0 %1225
    %s1228 = sor.u32 256, 16
    %1229 = vbcast.lane.b32.xlu0 %v1219, %s1228
    %v1230 = vpop.permute.xlu0 %1229
    %s1232 = sor.u32 256, 24
    %1233 = vbcast.lane.b32.xlu0 %v1219, %s1232
    %v1234 = vpop.permute.xlu0 %1233
    %v1235 = vlaneseq
    %v1236 = vshrl.u32 %v1235, 7
    %v1237 = vsub.s32 1, %v1236
    %v1238 = vrot.slane %v22, %v1237
    %1240 = vbcast.lane.b32.xlu0 %v1238, 256
    %v1241 = vpop.permute.xlu0 %1240
    %s1243 = sor.u32 256, 8
    %1244 = vbcast.lane.b32.xlu0 %v1238, %s1243
    %v1245 = vpop.permute.xlu0 %1244
    %s1247 = sor.u32 256, 16
    %1248 = vbcast.lane.b32.xlu0 %v1238, %s1247
    %v1249 = vpop.permute.xlu0 %1248
    %s1251 = sor.u32 256, 24
    %1252 = vbcast.lane.b32.xlu0 %v1238, %s1251
    %v1253 = vpop.permute.xlu0 %1252
    %v1254 = vlaneseq
    %v1255 = vshrl.u32 %v1254, 7
    %v1256 = vsub.s32 1, %v1255
    %v1257 = vrot.slane %v23, %v1256
    %1259 = vbcast.lane.b32.xlu0 %v1257, 256
    %v1260 = vpop.permute.xlu0 %1259
    %s1262 = sor.u32 256, 8
    %1263 = vbcast.lane.b32.xlu0 %v1257, %s1262
    %v1264 = vpop.permute.xlu0 %1263
    %s1266 = sor.u32 256, 16
    %1267 = vbcast.lane.b32.xlu0 %v1257, %s1266
    %v1268 = vpop.permute.xlu0 %1267
    %s1270 = sor.u32 256, 24
    %1271 = vbcast.lane.b32.xlu0 %v1257, %s1270
    %v1272 = vpop.permute.xlu0 %1271
    %v1273 = vlaneseq
    %v1274 = vshrl.u32 %v1273, 7
    %v1275 = vsub.s32 1, %v1274
    %v1276 = vrot.slane %v24, %v1275
    %1278 = vbcast.lane.b32.xlu0 %v1276, 256
    %v1279 = vpop.permute.xlu0 %1278
    %s1281 = sor.u32 256, 8
    %1282 = vbcast.lane.b32.xlu0 %v1276, %s1281
    %v1283 = vpop.permute.xlu0 %1282
    %s1285 = sor.u32 256, 16
    %1286 = vbcast.lane.b32.xlu0 %v1276, %s1285
    %v1287 = vpop.permute.xlu0 %1286
    %s1289 = sor.u32 256, 24
    %1290 = vbcast.lane.b32.xlu0 %v1276, %s1289
    %v1291 = vpop.permute.xlu0 %1290
    %v1292 = vlaneseq
    %v1293 = vshrl.u32 %v1292, 7
    %v1294 = vsub.s32 1, %v1293
    %v1295 = vrot.slane %v25, %v1294
    %1297 = vbcast.lane.b32.xlu0 %v1295, 256
    %v1298 = vpop.permute.xlu0 %1297
    %s1300 = sor.u32 256, 8
    %1301 = vbcast.lane.b32.xlu0 %v1295, %s1300
    %v1302 = vpop.permute.xlu0 %1301
    %s1304 = sor.u32 256, 16
    %1305 = vbcast.lane.b32.xlu0 %v1295, %s1304
    %v1306 = vpop.permute.xlu0 %1305
    %s1308 = sor.u32 256, 24
    %1309 = vbcast.lane.b32.xlu0 %v1295, %s1308
    %v1310 = vpop.permute.xlu0 %1309
    %v1343 = vmul.f32 %v1130, %v1165
    %v1344 = vmul.f32 %v1130, %v1169
    %v1345 = vmul.f32 %v1130, %v1173
    %v1346 = vmul.f32 %v1130, %v1177
    %v1347 = vmul.f32 %v1134, %v1184
    %v1348 = vmul.f32 %v1134, %v1188
    %v1349 = vmul.f32 %v1134, %v1192
    %v1350 = vmul.f32 %v1134, %v1196
    %v1351 = vmul.f32 %v1138, %v1203
    %v1352 = vmul.f32 %v1138, %v1207
    %v1353 = vmul.f32 %v1138, %v1211
    %v1354 = vmul.f32 %v1138, %v1215
    %v1355 = vmul.f32 %v1142, %v1222
    %v1356 = vmul.f32 %v1142, %v1226
    %v1357 = vmul.f32 %v1142, %v1230
    %v1358 = vmul.f32 %v1142, %v1234
    %v1359 = vmul.f32 %v1146, %v1241
    %v1360 = vmul.f32 %v1146, %v1245
    %v1361 = vmul.f32 %v1146, %v1249
    %v1362 = vmul.f32 %v1146, %v1253
    %v1363 = vmul.f32 %v1150, %v1260
    %v1364 = vmul.f32 %v1150, %v1264
    %v1365 = vmul.f32 %v1150, %v1268
    %v1366 = vmul.f32 %v1150, %v1272
    %v1367 = vmul.f32 %v1154, %v1279
    %v1368 = vmul.f32 %v1154, %v1283
    %v1369 = vmul.f32 %v1154, %v1287
    %v1370 = vmul.f32 %v1154, %v1291
    %v1371 = vmul.f32 %v1158, %v1298
    %v1372 = vmul.f32 %v1158, %v1302
    %v1373 = vmul.f32 %v1158, %v1306
    %v1374 = vmul.f32 %v1158, %v1310
    %v1375 = vadd.f32 %v1095, %v1343
    %v1376 = vadd.f32 %v1096, %v1344
    %v1377 = vadd.f32 %v1097, %v1345
    %v1378 = vadd.f32 %v1098, %v1346
    %v1379 = vadd.f32 %v1099, %v1347
    %v1380 = vadd.f32 %v1100, %v1348
    %v1381 = vadd.f32 %v1101, %v1349
    %v1382 = vadd.f32 %v1102, %v1350
    %v1383 = vadd.f32 %v1103, %v1351
    %v1384 = vadd.f32 %v1104, %v1352
    %v1385 = vadd.f32 %v1105, %v1353
    %v1386 = vadd.f32 %v1106, %v1354
    %v1387 = vadd.f32 %v1107, %v1355
    %v1388 = vadd.f32 %v1108, %v1356
    %v1389 = vadd.f32 %v1109, %v1357
    %v1390 = vadd.f32 %v1110, %v1358
    %v1391 = vadd.f32 %v1111, %v1359
    %v1392 = vadd.f32 %v1112, %v1360
    %v1393 = vadd.f32 %v1113, %v1361
    %v1394 = vadd.f32 %v1114, %v1362
    %v1395 = vadd.f32 %v1115, %v1363
    %v1396 = vadd.f32 %v1116, %v1364
    %v1397 = vadd.f32 %v1117, %v1365
    %v1398 = vadd.f32 %v1118, %v1366
    %v1399 = vadd.f32 %v1119, %v1367
    %v1400 = vadd.f32 %v1120, %v1368
    %v1401 = vadd.f32 %v1121, %v1369
    %v1402 = vadd.f32 %v1122, %v1370
    %v1403 = vadd.f32 %v1123, %v1371
    %v1404 = vadd.f32 %v1124, %v1372
    %v1405 = vadd.f32 %v1125, %v1373
    %v1406 = vadd.f32 %v1126, %v1374
    %v1407 = vlaneseq
    %v1408 = vshrl.u32 %v1407, 7
    %v1409 = vsub.s32 2, %v1408
    %v1410 = vrot.slane %v789, %v1409
    %v1411 = vlaneseq
    %v1412 = vshrl.u32 %v1411, 7
    %v1413 = vsub.s32 2, %v1412
    %v1414 = vrot.slane %v791, %v1413
    %v1415 = vlaneseq
    %v1416 = vshrl.u32 %v1415, 7
    %v1417 = vsub.s32 2, %v1416
    %v1418 = vrot.slane %v793, %v1417
    %v1419 = vlaneseq
    %v1420 = vshrl.u32 %v1419, 7
    %v1421 = vsub.s32 2, %v1420
    %v1422 = vrot.slane %v795, %v1421
    %v1423 = vlaneseq
    %v1424 = vshrl.u32 %v1423, 7
    %v1425 = vsub.s32 2, %v1424
    %v1426 = vrot.slane %v797, %v1425
    %v1427 = vlaneseq
    %v1428 = vshrl.u32 %v1427, 7
    %v1429 = vsub.s32 2, %v1428
    %v1430 = vrot.slane %v799, %v1429
    %v1431 = vlaneseq
    %v1432 = vshrl.u32 %v1431, 7
    %v1433 = vsub.s32 2, %v1432
    %v1434 = vrot.slane %v801, %v1433
    %v1435 = vlaneseq
    %v1436 = vshrl.u32 %v1435, 7
    %v1437 = vsub.s32 2, %v1436
    %v1438 = vrot.slane %v803, %v1437
    %v1439 = vlaneseq
    %v1440 = vshrl.u32 %v1439, 7
    %v1441 = vsub.s32 2, %v1440
    %v1442 = vrot.slane %v18, %v1441
    %1444 = vbcast.lane.b32.xlu0 %v1442, 256
    %v1445 = vpop.permute.xlu0 %1444
    %s1447 = sor.u32 256, 8
    %1448 = vbcast.lane.b32.xlu0 %v1442, %s1447
    %v1449 = vpop.permute.xlu0 %1448
    %s1451 = sor.u32 256, 16
    %1452 = vbcast.lane.b32.xlu0 %v1442, %s1451
    %v1453 = vpop.permute.xlu0 %1452
    %s1455 = sor.u32 256, 24
    %1456 = vbcast.lane.b32.xlu0 %v1442, %s1455
    %v1457 = vpop.permute.xlu0 %1456
    %v1458 = vlaneseq
    %v1459 = vshrl.u32 %v1458, 7
    %v1460 = vsub.s32 2, %v1459
    %v1461 = vrot.slane %v19, %v1460
    %1463 = vbcast.lane.b32.xlu0 %v1461, 256
    %v1464 = vpop.permute.xlu0 %1463
    %s1466 = sor.u32 256, 8
    %1467 = vbcast.lane.b32.xlu0 %v1461, %s1466
    %v1468 = vpop.permute.xlu0 %1467
    %s1470 = sor.u32 256, 16
    %1471 = vbcast.lane.b32.xlu0 %v1461, %s1470
    %v1472 = vpop.permute.xlu0 %1471
    %s1474 = sor.u32 256, 24
    %1475 = vbcast.lane.b32.xlu0 %v1461, %s1474
    %v1476 = vpop.permute.xlu0 %1475
    %v1477 = vlaneseq
    %v1478 = vshrl.u32 %v1477, 7
    %v1479 = vsub.s32 2, %v1478
    %v1480 = vrot.slane %v20, %v1479
    %1482 = vbcast.lane.b32.xlu0 %v1480, 256
    %v1483 = vpop.permute.xlu0 %1482
    %s1485 = sor.u32 256, 8
    %1486 = vbcast.lane.b32.xlu0 %v1480, %s1485
    %v1487 = vpop.permute.xlu0 %1486
    %s1489 = sor.u32 256, 16
    %1490 = vbcast.lane.b32.xlu0 %v1480, %s1489
    %v1491 = vpop.permute.xlu0 %1490
    %s1493 = sor.u32 256, 24
    %1494 = vbcast.lane.b32.xlu0 %v1480, %s1493
    %v1495 = vpop.permute.xlu0 %1494
    %v1496 = vlaneseq
    %v1497 = vshrl.u32 %v1496, 7
    %v1498 = vsub.s32 2, %v1497
    %v1499 = vrot.slane %v21, %v1498
    %1501 = vbcast.lane.b32.xlu0 %v1499, 256
    %v1502 = vpop.permute.xlu0 %1501
    %s1504 = sor.u32 256, 8
    %1505 = vbcast.lane.b32.xlu0 %v1499, %s1504
    %v1506 = vpop.permute.xlu0 %1505
    %s1508 = sor.u32 256, 16
    %1509 = vbcast.lane.b32.xlu0 %v1499, %s1508
    %v1510 = vpop.permute.xlu0 %1509
    %s1512 = sor.u32 256, 24
    %1513 = vbcast.lane.b32.xlu0 %v1499, %s1512
    %v1514 = vpop.permute.xlu0 %1513
    %v1515 = vlaneseq
    %v1516 = vshrl.u32 %v1515, 7
    %v1517 = vsub.s32 2, %v1516
    %v1518 = vrot.slane %v22, %v1517
    %1520 = vbcast.lane.b32.xlu0 %v1518, 256
    %v1521 = vpop.permute.xlu0 %1520
    %s1523 = sor.u32 256, 8
    %1524 = vbcast.lane.b32.xlu0 %v1518, %s1523
    %v1525 = vpop.permute.xlu0 %1524
    %s1527 = sor.u32 256, 16
    %1528 = vbcast.lane.b32.xlu0 %v1518, %s1527
    %v1529 = vpop.permute.xlu0 %1528
    %s1531 = sor.u32 256, 24
    %1532 = vbcast.lane.b32.xlu0 %v1518, %s1531
    %v1533 = vpop.permute.xlu0 %1532
    %v1534 = vlaneseq
    %v1535 = vshrl.u32 %v1534, 7
    %v1536 = vsub.s32 2, %v1535
    %v1537 = vrot.slane %v23, %v1536
    %1539 = vbcast.lane.b32.xlu0 %v1537, 256
    %v1540 = vpop.permute.xlu0 %1539
    %s1542 = sor.u32 256, 8
    %1543 = vbcast.lane.b32.xlu0 %v1537, %s1542
    %v1544 = vpop.permute.xlu0 %1543
    %s1546 = sor.u32 256, 16
    %1547 = vbcast.lane.b32.xlu0 %v1537, %s1546
    %v1548 = vpop.permute.xlu0 %1547
    %s1550 = sor.u32 256, 24
    %1551 = vbcast.lane.b32.xlu0 %v1537, %s1550
    %v1552 = vpop.permute.xlu0 %1551
    %v1553 = vlaneseq
    %v1554 = vshrl.u32 %v1553, 7
    %v1555 = vsub.s32 2, %v1554
    %v1556 = vrot.slane %v24, %v1555
    %1558 = vbcast.lane.b32.xlu0 %v1556, 256
    %v1559 = vpop.permute.xlu0 %1558
    %s1561 = sor.u32 256, 8
    %1562 = vbcast.lane.b32.xlu0 %v1556, %s1561
    %v1563 = vpop.permute.xlu0 %1562
    %s1565 = sor.u32 256, 16
    %1566 = vbcast.lane.b32.xlu0 %v1556, %s1565
    %v1567 = vpop.permute.xlu0 %1566
    %s1569 = sor.u32 256, 24
    %1570 = vbcast.lane.b32.xlu0 %v1556, %s1569
    %v1571 = vpop.permute.xlu0 %1570
    %v1572 = vlaneseq
    %v1573 = vshrl.u32 %v1572, 7
    %v1574 = vsub.s32 2, %v1573
    %v1575 = vrot.slane %v25, %v1574
    %1577 = vbcast.lane.b32.xlu0 %v1575, 256
    %v1578 = vpop.permute.xlu0 %1577
    %s1580 = sor.u32 256, 8
    %1581 = vbcast.lane.b32.xlu0 %v1575, %s1580
    %v1582 = vpop.permute.xlu0 %1581
    %s1584 = sor.u32 256, 16
    %1585 = vbcast.lane.b32.xlu0 %v1575, %s1584
    %v1586 = vpop.permute.xlu0 %1585
    %s1588 = sor.u32 256, 24
    %1589 = vbcast.lane.b32.xlu0 %v1575, %s1588
    %v1590 = vpop.permute.xlu0 %1589
    %v1623 = vmul.f32 %v1410, %v1445
    %v1624 = vmul.f32 %v1410, %v1449
    %v1625 = vmul.f32 %v1410, %v1453
    %v1626 = vmul.f32 %v1410, %v1457
    %v1627 = vmul.f32 %v1414, %v1464
    %v1628 = vmul.f32 %v1414, %v1468
    %v1629 = vmul.f32 %v1414, %v1472
    %v1630 = vmul.f32 %v1414, %v1476
    %v1631 = vmul.f32 %v1418, %v1483
    %v1632 = vmul.f32 %v1418, %v1487
    %v1633 = vmul.f32 %v1418, %v1491
    %v1634 = vmul.f32 %v1418, %v1495
    %v1635 = vmul.f32 %v1422, %v1502
    %v1636 = vmul.f32 %v1422, %v1506
    %v1637 = vmul.f32 %v1422, %v1510
    %v1638 = vmul.f32 %v1422, %v1514
    %v1639 = vmul.f32 %v1426, %v1521
    %v1640 = vmul.f32 %v1426, %v1525
    %v1641 = vmul.f32 %v1426, %v1529
    %v1642 = vmul.f32 %v1426, %v1533
    %v1643 = vmul.f32 %v1430, %v1540
    %v1644 = vmul.f32 %v1430, %v1544
    %v1645 = vmul.f32 %v1430, %v1548
    %v1646 = vmul.f32 %v1430, %v1552
    %v1647 = vmul.f32 %v1434, %v1559
    %v1648 = vmul.f32 %v1434, %v1563
    %v1649 = vmul.f32 %v1434, %v1567
    %v1650 = vmul.f32 %v1434, %v1571
    %v1651 = vmul.f32 %v1438, %v1578
    %v1652 = vmul.f32 %v1438, %v1582
    %v1653 = vmul.f32 %v1438, %v1586
    %v1654 = vmul.f32 %v1438, %v1590
    %v1655 = vadd.f32 %v1375, %v1623
    %v1656 = vadd.f32 %v1376, %v1624
    %v1657 = vadd.f32 %v1377, %v1625
    %v1658 = vadd.f32 %v1378, %v1626
    %v1659 = vadd.f32 %v1379, %v1627
    %v1660 = vadd.f32 %v1380, %v1628
    %v1661 = vadd.f32 %v1381, %v1629
    %v1662 = vadd.f32 %v1382, %v1630
    %v1663 = vadd.f32 %v1383, %v1631
    %v1664 = vadd.f32 %v1384, %v1632
    %v1665 = vadd.f32 %v1385, %v1633
    %v1666 = vadd.f32 %v1386, %v1634
    %v1667 = vadd.f32 %v1387, %v1635
    %v1668 = vadd.f32 %v1388, %v1636
    %v1669 = vadd.f32 %v1389, %v1637
    %v1670 = vadd.f32 %v1390, %v1638
    %v1671 = vadd.f32 %v1391, %v1639
    %v1672 = vadd.f32 %v1392, %v1640
    %v1673 = vadd.f32 %v1393, %v1641
    %v1674 = vadd.f32 %v1394, %v1642
    %v1675 = vadd.f32 %v1395, %v1643
    %v1676 = vadd.f32 %v1396, %v1644
    %v1677 = vadd.f32 %v1397, %v1645
    %v1678 = vadd.f32 %v1398, %v1646
    %v1679 = vadd.f32 %v1399, %v1647
    %v1680 = vadd.f32 %v1400, %v1648
    %v1681 = vadd.f32 %v1401, %v1649
    %v1682 = vadd.f32 %v1402, %v1650
    %v1683 = vadd.f32 %v1403, %v1651
    %v1684 = vadd.f32 %v1404, %v1652
    %v1685 = vadd.f32 %v1405, %v1653
    %v1686 = vadd.f32 %v1406, %v1654
    %v1687 = vlaneseq
    %v1688 = vshrl.u32 %v1687, 7
    %v1689 = vsub.s32 3, %v1688
    %v1690 = vrot.slane %v789, %v1689
    %v1691 = vlaneseq
    %v1692 = vshrl.u32 %v1691, 7
    %v1693 = vsub.s32 3, %v1692
    %v1694 = vrot.slane %v791, %v1693
    %v1695 = vlaneseq
    %v1696 = vshrl.u32 %v1695, 7
    %v1697 = vsub.s32 3, %v1696
    %v1698 = vrot.slane %v793, %v1697
    %v1699 = vlaneseq
    %v1700 = vshrl.u32 %v1699, 7
    %v1701 = vsub.s32 3, %v1700
    %v1702 = vrot.slane %v795, %v1701
    %v1703 = vlaneseq
    %v1704 = vshrl.u32 %v1703, 7
    %v1705 = vsub.s32 3, %v1704
    %v1706 = vrot.slane %v797, %v1705
    %v1707 = vlaneseq
    %v1708 = vshrl.u32 %v1707, 7
    %v1709 = vsub.s32 3, %v1708
    %v1710 = vrot.slane %v799, %v1709
    %v1711 = vlaneseq
    %v1712 = vshrl.u32 %v1711, 7
    %v1713 = vsub.s32 3, %v1712
    %v1714 = vrot.slane %v801, %v1713
    %v1715 = vlaneseq
    %v1716 = vshrl.u32 %v1715, 7
    %v1717 = vsub.s32 3, %v1716
    %v1718 = vrot.slane %v803, %v1717
    %v1719 = vlaneseq
    %v1720 = vshrl.u32 %v1719, 7
    %v1721 = vsub.s32 3, %v1720
    %v1722 = vrot.slane %v18, %v1721
    %1724 = vbcast.lane.b32.xlu0 %v1722, 256
    %v1725 = vpop.permute.xlu0 %1724
    %s1727 = sor.u32 256, 8
    %1728 = vbcast.lane.b32.xlu0 %v1722, %s1727
    %v1729 = vpop.permute.xlu0 %1728
    %s1731 = sor.u32 256, 16
    %1732 = vbcast.lane.b32.xlu0 %v1722, %s1731
    %v1733 = vpop.permute.xlu0 %1732
    %s1735 = sor.u32 256, 24
    %1736 = vbcast.lane.b32.xlu0 %v1722, %s1735
    %v1737 = vpop.permute.xlu0 %1736
    %v1738 = vlaneseq
    %v1739 = vshrl.u32 %v1738, 7
    %v1740 = vsub.s32 3, %v1739
    %v1741 = vrot.slane %v19, %v1740
    %1743 = vbcast.lane.b32.xlu0 %v1741, 256
    %v1744 = vpop.permute.xlu0 %1743
    %s1746 = sor.u32 256, 8
    %1747 = vbcast.lane.b32.xlu0 %v1741, %s1746
    %v1748 = vpop.permute.xlu0 %1747
    %s1750 = sor.u32 256, 16
    %1751 = vbcast.lane.b32.xlu0 %v1741, %s1750
    %v1752 = vpop.permute.xlu0 %1751
    %s1754 = sor.u32 256, 24
    %1755 = vbcast.lane.b32.xlu0 %v1741, %s1754
    %v1756 = vpop.permute.xlu0 %1755
    %v1757 = vlaneseq
    %v1758 = vshrl.u32 %v1757, 7
    %v1759 = vsub.s32 3, %v1758
    %v1760 = vrot.slane %v20, %v1759
    %1762 = vbcast.lane.b32.xlu0 %v1760, 256
    %v1763 = vpop.permute.xlu0 %1762
    %s1765 = sor.u32 256, 8
    %1766 = vbcast.lane.b32.xlu0 %v1760, %s1765
    %v1767 = vpop.permute.xlu0 %1766
    %s1769 = sor.u32 256, 16
    %1770 = vbcast.lane.b32.xlu0 %v1760, %s1769
    %v1771 = vpop.permute.xlu0 %1770
    %s1773 = sor.u32 256, 24
    %1774 = vbcast.lane.b32.xlu0 %v1760, %s1773
    %v1775 = vpop.permute.xlu0 %1774
    %v1776 = vlaneseq
    %v1777 = vshrl.u32 %v1776, 7
    %v1778 = vsub.s32 3, %v1777
    %v1779 = vrot.slane %v21, %v1778
    %1781 = vbcast.lane.b32.xlu0 %v1779, 256
    %v1782 = vpop.permute.xlu0 %1781
    %s1784 = sor.u32 256, 8
    %1785 = vbcast.lane.b32.xlu0 %v1779, %s1784
    %v1786 = vpop.permute.xlu0 %1785
    %s1788 = sor.u32 256, 16
    %1789 = vbcast.lane.b32.xlu0 %v1779, %s1788
    %v1790 = vpop.permute.xlu0 %1789
    %s1792 = sor.u32 256, 24
    %1793 = vbcast.lane.b32.xlu0 %v1779, %s1792
    %v1794 = vpop.permute.xlu0 %1793
    %v1795 = vlaneseq
    %v1796 = vshrl.u32 %v1795, 7
    %v1797 = vsub.s32 3, %v1796
    %v1798 = vrot.slane %v22, %v1797
    %1800 = vbcast.lane.b32.xlu0 %v1798, 256
    %v1801 = vpop.permute.xlu0 %1800
    %s1803 = sor.u32 256, 8
    %1804 = vbcast.lane.b32.xlu0 %v1798, %s1803
    %v1805 = vpop.permute.xlu0 %1804
    %s1807 = sor.u32 256, 16
    %1808 = vbcast.lane.b32.xlu0 %v1798, %s1807
    %v1809 = vpop.permute.xlu0 %1808
    %s1811 = sor.u32 256, 24
    %1812 = vbcast.lane.b32.xlu0 %v1798, %s1811
    %v1813 = vpop.permute.xlu0 %1812
    %v1814 = vlaneseq
    %v1815 = vshrl.u32 %v1814, 7
    %v1816 = vsub.s32 3, %v1815
    %v1817 = vrot.slane %v23, %v1816
    %1819 = vbcast.lane.b32.xlu0 %v1817, 256
    %v1820 = vpop.permute.xlu0 %1819
    %s1822 = sor.u32 256, 8
    %1823 = vbcast.lane.b32.xlu0 %v1817, %s1822
    %v1824 = vpop.permute.xlu0 %1823
    %s1826 = sor.u32 256, 16
    %1827 = vbcast.lane.b32.xlu0 %v1817, %s1826
    %v1828 = vpop.permute.xlu0 %1827
    %s1830 = sor.u32 256, 24
    %1831 = vbcast.lane.b32.xlu0 %v1817, %s1830
    %v1832 = vpop.permute.xlu0 %1831
    %v1833 = vlaneseq
    %v1834 = vshrl.u32 %v1833, 7
    %v1835 = vsub.s32 3, %v1834
    %v1836 = vrot.slane %v24, %v1835
    %1838 = vbcast.lane.b32.xlu0 %v1836, 256
    %v1839 = vpop.permute.xlu0 %1838
    %s1841 = sor.u32 256, 8
    %1842 = vbcast.lane.b32.xlu0 %v1836, %s1841
    %v1843 = vpop.permute.xlu0 %1842
    %s1845 = sor.u32 256, 16
    %1846 = vbcast.lane.b32.xlu0 %v1836, %s1845
    %v1847 = vpop.permute.xlu0 %1846
    %s1849 = sor.u32 256, 24
    %1850 = vbcast.lane.b32.xlu0 %v1836, %s1849
    %v1851 = vpop.permute.xlu0 %1850
    %v1852 = vlaneseq
    %v1853 = vshrl.u32 %v1852, 7
    %v1854 = vsub.s32 3, %v1853
    %v1855 = vrot.slane %v25, %v1854
    %1857 = vbcast.lane.b32.xlu0 %v1855, 256
    %v1858 = vpop.permute.xlu0 %1857
    %s1860 = sor.u32 256, 8
    %1861 = vbcast.lane.b32.xlu0 %v1855, %s1860
    %v1862 = vpop.permute.xlu0 %1861
    %s1864 = sor.u32 256, 16
    %1865 = vbcast.lane.b32.xlu0 %v1855, %s1864
    %v1866 = vpop.permute.xlu0 %1865
    %s1868 = sor.u32 256, 24
    %1869 = vbcast.lane.b32.xlu0 %v1855, %s1868
    %v1870 = vpop.permute.xlu0 %1869
    %v1903 = vmul.f32 %v1690, %v1725
    %v1904 = vmul.f32 %v1690, %v1729
    %v1905 = vmul.f32 %v1690, %v1733
    %v1906 = vmul.f32 %v1690, %v1737
    %v1907 = vmul.f32 %v1694, %v1744
    %v1908 = vmul.f32 %v1694, %v1748
    %v1909 = vmul.f32 %v1694, %v1752
    %v1910 = vmul.f32 %v1694, %v1756
    %v1911 = vmul.f32 %v1698, %v1763
    %v1912 = vmul.f32 %v1698, %v1767
    %v1913 = vmul.f32 %v1698, %v1771
    %v1914 = vmul.f32 %v1698, %v1775
    %v1915 = vmul.f32 %v1702, %v1782
    %v1916 = vmul.f32 %v1702, %v1786
    %v1917 = vmul.f32 %v1702, %v1790
    %v1918 = vmul.f32 %v1702, %v1794
    %v1919 = vmul.f32 %v1706, %v1801
    %v1920 = vmul.f32 %v1706, %v1805
    %v1921 = vmul.f32 %v1706, %v1809
    %v1922 = vmul.f32 %v1706, %v1813
    %v1923 = vmul.f32 %v1710, %v1820
    %v1924 = vmul.f32 %v1710, %v1824
    %v1925 = vmul.f32 %v1710, %v1828
    %v1926 = vmul.f32 %v1710, %v1832
    %v1927 = vmul.f32 %v1714, %v1839
    %v1928 = vmul.f32 %v1714, %v1843
    %v1929 = vmul.f32 %v1714, %v1847
    %v1930 = vmul.f32 %v1714, %v1851
    %v1931 = vmul.f32 %v1718, %v1858
    %v1932 = vmul.f32 %v1718, %v1862
    %v1933 = vmul.f32 %v1718, %v1866
    %v1934 = vmul.f32 %v1718, %v1870
    %v1935 = vadd.f32 %v1655, %v1903
    %v1936 = vadd.f32 %v1656, %v1904
    %v1937 = vadd.f32 %v1657, %v1905
    %v1938 = vadd.f32 %v1658, %v1906
    %v1939 = vadd.f32 %v1659, %v1907
    %v1940 = vadd.f32 %v1660, %v1908
    %v1941 = vadd.f32 %v1661, %v1909
    %v1942 = vadd.f32 %v1662, %v1910
    %v1943 = vadd.f32 %v1663, %v1911
    %v1944 = vadd.f32 %v1664, %v1912
    %v1945 = vadd.f32 %v1665, %v1913
    %v1946 = vadd.f32 %v1666, %v1914
    %v1947 = vadd.f32 %v1667, %v1915
    %v1948 = vadd.f32 %v1668, %v1916
    %v1949 = vadd.f32 %v1669, %v1917
    %v1950 = vadd.f32 %v1670, %v1918
    %v1951 = vadd.f32 %v1671, %v1919
    %v1952 = vadd.f32 %v1672, %v1920
    %v1953 = vadd.f32 %v1673, %v1921
    %v1954 = vadd.f32 %v1674, %v1922
    %v1955 = vadd.f32 %v1675, %v1923
    %v1956 = vadd.f32 %v1676, %v1924
    %v1957 = vadd.f32 %v1677, %v1925
    %v1958 = vadd.f32 %v1678, %v1926
    %v1959 = vadd.f32 %v1679, %v1927
    %v1960 = vadd.f32 %v1680, %v1928
    %v1961 = vadd.f32 %v1681, %v1929
    %v1962 = vadd.f32 %v1682, %v1930
    %v1963 = vadd.f32 %v1683, %v1931
    %v1964 = vadd.f32 %v1684, %v1932
    %v1965 = vadd.f32 %v1685, %v1933
    %v1966 = vadd.f32 %v1686, %v1934
    %v1967 = vlaneseq
    %v1968 = vshrl.u32 %v1967, 7
    %v1969 = vsub.s32 4, %v1968
    %v1970 = vrot.slane %v789, %v1969
    %v1971 = vlaneseq
    %v1972 = vshrl.u32 %v1971, 7
    %v1973 = vsub.s32 4, %v1972
    %v1974 = vrot.slane %v791, %v1973
    %v1975 = vlaneseq
    %v1976 = vshrl.u32 %v1975, 7
    %v1977 = vsub.s32 4, %v1976
    %v1978 = vrot.slane %v793, %v1977
    %v1979 = vlaneseq
    %v1980 = vshrl.u32 %v1979, 7
    %v1981 = vsub.s32 4, %v1980
    %v1982 = vrot.slane %v795, %v1981
    %v1983 = vlaneseq
    %v1984 = vshrl.u32 %v1983, 7
    %v1985 = vsub.s32 4, %v1984
    %v1986 = vrot.slane %v797, %v1985
    %v1987 = vlaneseq
    %v1988 = vshrl.u32 %v1987, 7
    %v1989 = vsub.s32 4, %v1988
    %v1990 = vrot.slane %v799, %v1989
    %v1991 = vlaneseq
    %v1992 = vshrl.u32 %v1991, 7
    %v1993 = vsub.s32 4, %v1992
    %v1994 = vrot.slane %v801, %v1993
    %v1995 = vlaneseq
    %v1996 = vshrl.u32 %v1995, 7
    %v1997 = vsub.s32 4, %v1996
    %v1998 = vrot.slane %v803, %v1997
    %v1999 = vlaneseq
    %v2000 = vshrl.u32 %v1999, 7
    %v2001 = vsub.s32 4, %v2000
    %v2002 = vrot.slane %v18, %v2001
    %2004 = vbcast.lane.b32.xlu0 %v2002, 256
    %v2005 = vpop.permute.xlu0 %2004
    %s2007 = sor.u32 256, 8
    %2008 = vbcast.lane.b32.xlu0 %v2002, %s2007
    %v2009 = vpop.permute.xlu0 %2008
    %s2011 = sor.u32 256, 16
    %2012 = vbcast.lane.b32.xlu0 %v2002, %s2011
    %v2013 = vpop.permute.xlu0 %2012
    %s2015 = sor.u32 256, 24
    %2016 = vbcast.lane.b32.xlu0 %v2002, %s2015
    %v2017 = vpop.permute.xlu0 %2016
    %v2018 = vlaneseq
    %v2019 = vshrl.u32 %v2018, 7
    %v2020 = vsub.s32 4, %v2019
    %v2021 = vrot.slane %v19, %v2020
    %2023 = vbcast.lane.b32.xlu0 %v2021, 256
    %v2024 = vpop.permute.xlu0 %2023
    %s2026 = sor.u32 256, 8
    %2027 = vbcast.lane.b32.xlu0 %v2021, %s2026
    %v2028 = vpop.permute.xlu0 %2027
    %s2030 = sor.u32 256, 16
    %2031 = vbcast.lane.b32.xlu0 %v2021, %s2030
    %v2032 = vpop.permute.xlu0 %2031
    %s2034 = sor.u32 256, 24
    %2035 = vbcast.lane.b32.xlu0 %v2021, %s2034
    %v2036 = vpop.permute.xlu0 %2035
    %v2037 = vlaneseq
    %v2038 = vshrl.u32 %v2037, 7
    %v2039 = vsub.s32 4, %v2038
    %v2040 = vrot.slane %v20, %v2039
    %2042 = vbcast.lane.b32.xlu0 %v2040, 256
    %v2043 = vpop.permute.xlu0 %2042
    %s2045 = sor.u32 256, 8
    %2046 = vbcast.lane.b32.xlu0 %v2040, %s2045
    %v2047 = vpop.permute.xlu0 %2046
    %s2049 = sor.u32 256, 16
    %2050 = vbcast.lane.b32.xlu0 %v2040, %s2049
    %v2051 = vpop.permute.xlu0 %2050
    %s2053 = sor.u32 256, 24
    %2054 = vbcast.lane.b32.xlu0 %v2040, %s2053
    %v2055 = vpop.permute.xlu0 %2054
    %v2056 = vlaneseq
    %v2057 = vshrl.u32 %v2056, 7
    %v2058 = vsub.s32 4, %v2057
    %v2059 = vrot.slane %v21, %v2058
    %2061 = vbcast.lane.b32.xlu0 %v2059, 256
    %v2062 = vpop.permute.xlu0 %2061
    %s2064 = sor.u32 256, 8
    %2065 = vbcast.lane.b32.xlu0 %v2059, %s2064
    %v2066 = vpop.permute.xlu0 %2065
    %s2068 = sor.u32 256, 16
    %2069 = vbcast.lane.b32.xlu0 %v2059, %s2068
    %v2070 = vpop.permute.xlu0 %2069
    %s2072 = sor.u32 256, 24
    %2073 = vbcast.lane.b32.xlu0 %v2059, %s2072
    %v2074 = vpop.permute.xlu0 %2073
    %v2075 = vlaneseq
    %v2076 = vshrl.u32 %v2075, 7
    %v2077 = vsub.s32 4, %v2076
    %v2078 = vrot.slane %v22, %v2077
    %2080 = vbcast.lane.b32.xlu0 %v2078, 256
    %v2081 = vpop.permute.xlu0 %2080
    %s2083 = sor.u32 256, 8
    %2084 = vbcast.lane.b32.xlu0 %v2078, %s2083
    %v2085 = vpop.permute.xlu0 %2084
    %s2087 = sor.u32 256, 16
    %2088 = vbcast.lane.b32.xlu0 %v2078, %s2087
    %v2089 = vpop.permute.xlu0 %2088
    %s2091 = sor.u32 256, 24
    %2092 = vbcast.lane.b32.xlu0 %v2078, %s2091
    %v2093 = vpop.permute.xlu0 %2092
    %v2094 = vlaneseq
    %v2095 = vshrl.u32 %v2094, 7
    %v2096 = vsub.s32 4, %v2095
    %v2097 = vrot.slane %v23, %v2096
    %2099 = vbcast.lane.b32.xlu0 %v2097, 256
    %v2100 = vpop.permute.xlu0 %2099
    %s2102 = sor.u32 256, 8
    %2103 = vbcast.lane.b32.xlu0 %v2097, %s2102
    %v2104 = vpop.permute.xlu0 %2103
    %s2106 = sor.u32 256, 16
    %2107 = vbcast.lane.b32.xlu0 %v2097, %s2106
    %v2108 = vpop.permute.xlu0 %2107
    %s2110 = sor.u32 256, 24
    %2111 = vbcast.lane.b32.xlu0 %v2097, %s2110
    %v2112 = vpop.permute.xlu0 %2111
    %v2113 = vlaneseq
    %v2114 = vshrl.u32 %v2113, 7
    %v2115 = vsub.s32 4, %v2114
    %v2116 = vrot.slane %v24, %v2115
    %2118 = vbcast.lane.b32.xlu0 %v2116, 256
    %v2119 = vpop.permute.xlu0 %2118
    %s2121 = sor.u32 256, 8
    %2122 = vbcast.lane.b32.xlu0 %v2116, %s2121
    %v2123 = vpop.permute.xlu0 %2122
    %s2125 = sor.u32 256, 16
    %2126 = vbcast.lane.b32.xlu0 %v2116, %s2125
    %v2127 = vpop.permute.xlu0 %2126
    %s2129 = sor.u32 256, 24
    %2130 = vbcast.lane.b32.xlu0 %v2116, %s2129
    %v2131 = vpop.permute.xlu0 %2130
    %v2132 = vlaneseq
    %v2133 = vshrl.u32 %v2132, 7
    %v2134 = vsub.s32 4, %v2133
    %v2135 = vrot.slane %v25, %v2134
    %2137 = vbcast.lane.b32.xlu0 %v2135, 256
    %v2138 = vpop.permute.xlu0 %2137
    %s2140 = sor.u32 256, 8
    %2141 = vbcast.lane.b32.xlu0 %v2135, %s2140
    %v2142 = vpop.permute.xlu0 %2141
    %s2144 = sor.u32 256, 16
    %2145 = vbcast.lane.b32.xlu0 %v2135, %s2144
    %v2146 = vpop.permute.xlu0 %2145
    %s2148 = sor.u32 256, 24
    %2149 = vbcast.lane.b32.xlu0 %v2135, %s2148
    %v2150 = vpop.permute.xlu0 %2149
    %v2183 = vmul.f32 %v1970, %v2005
    %v2184 = vmul.f32 %v1970, %v2009
    %v2185 = vmul.f32 %v1970, %v2013
    %v2186 = vmul.f32 %v1970, %v2017
    %v2187 = vmul.f32 %v1974, %v2024
    %v2188 = vmul.f32 %v1974, %v2028
    %v2189 = vmul.f32 %v1974, %v2032
    %v2190 = vmul.f32 %v1974, %v2036
    %v2191 = vmul.f32 %v1978, %v2043
    %v2192 = vmul.f32 %v1978, %v2047
    %v2193 = vmul.f32 %v1978, %v2051
    %v2194 = vmul.f32 %v1978, %v2055
    %v2195 = vmul.f32 %v1982, %v2062
    %v2196 = vmul.f32 %v1982, %v2066
    %v2197 = vmul.f32 %v1982, %v2070
    %v2198 = vmul.f32 %v1982, %v2074
    %v2199 = vmul.f32 %v1986, %v2081
    %v2200 = vmul.f32 %v1986, %v2085
    %v2201 = vmul.f32 %v1986, %v2089
    %v2202 = vmul.f32 %v1986, %v2093
    %v2203 = vmul.f32 %v1990, %v2100
    %v2204 = vmul.f32 %v1990, %v2104
    %v2205 = vmul.f32 %v1990, %v2108
    %v2206 = vmul.f32 %v1990, %v2112
    %v2207 = vmul.f32 %v1994, %v2119
    %v2208 = vmul.f32 %v1994, %v2123
    %v2209 = vmul.f32 %v1994, %v2127
    %v2210 = vmul.f32 %v1994, %v2131
    %v2211 = vmul.f32 %v1998, %v2138
    %v2212 = vmul.f32 %v1998, %v2142
    %v2213 = vmul.f32 %v1998, %v2146
    %v2214 = vmul.f32 %v1998, %v2150
    %v2215 = vadd.f32 %v1935, %v2183
    %v2216 = vadd.f32 %v1936, %v2184
    %v2217 = vadd.f32 %v1937, %v2185
    %v2218 = vadd.f32 %v1938, %v2186
    %v2219 = vadd.f32 %v1939, %v2187
    %v2220 = vadd.f32 %v1940, %v2188
    %v2221 = vadd.f32 %v1941, %v2189
    %v2222 = vadd.f32 %v1942, %v2190
    %v2223 = vadd.f32 %v1943, %v2191
    %v2224 = vadd.f32 %v1944, %v2192
    %v2225 = vadd.f32 %v1945, %v2193
    %v2226 = vadd.f32 %v1946, %v2194
    %v2227 = vadd.f32 %v1947, %v2195
    %v2228 = vadd.f32 %v1948, %v2196
    %v2229 = vadd.f32 %v1949, %v2197
    %v2230 = vadd.f32 %v1950, %v2198
    %v2231 = vadd.f32 %v1951, %v2199
    %v2232 = vadd.f32 %v1952, %v2200
    %v2233 = vadd.f32 %v1953, %v2201
    %v2234 = vadd.f32 %v1954, %v2202
    %v2235 = vadd.f32 %v1955, %v2203
    %v2236 = vadd.f32 %v1956, %v2204
    %v2237 = vadd.f32 %v1957, %v2205
    %v2238 = vadd.f32 %v1958, %v2206
    %v2239 = vadd.f32 %v1959, %v2207
    %v2240 = vadd.f32 %v1960, %v2208
    %v2241 = vadd.f32 %v1961, %v2209
    %v2242 = vadd.f32 %v1962, %v2210
    %v2243 = vadd.f32 %v1963, %v2211
    %v2244 = vadd.f32 %v1964, %v2212
    %v2245 = vadd.f32 %v1965, %v2213
    %v2246 = vadd.f32 %v1966, %v2214
    %v2247 = vlaneseq
    %v2248 = vshrl.u32 %v2247, 7
    %v2249 = vsub.s32 5, %v2248
    %v2250 = vrot.slane %v789, %v2249
    %v2251 = vlaneseq
    %v2252 = vshrl.u32 %v2251, 7
    %v2253 = vsub.s32 5, %v2252
    %v2254 = vrot.slane %v791, %v2253
    %v2255 = vlaneseq
    %v2256 = vshrl.u32 %v2255, 7
    %v2257 = vsub.s32 5, %v2256
    %v2258 = vrot.slane %v793, %v2257
    %v2259 = vlaneseq
    %v2260 = vshrl.u32 %v2259, 7
    %v2261 = vsub.s32 5, %v2260
    %v2262 = vrot.slane %v795, %v2261
    %v2263 = vlaneseq
    %v2264 = vshrl.u32 %v2263, 7
    %v2265 = vsub.s32 5, %v2264
    %v2266 = vrot.slane %v797, %v2265
    %v2267 = vlaneseq
    %v2268 = vshrl.u32 %v2267, 7
    %v2269 = vsub.s32 5, %v2268
    %v2270 = vrot.slane %v799, %v2269
    %v2271 = vlaneseq
    %v2272 = vshrl.u32 %v2271, 7
    %v2273 = vsub.s32 5, %v2272
    %v2274 = vrot.slane %v801, %v2273
    %v2275 = vlaneseq
    %v2276 = vshrl.u32 %v2275, 7
    %v2277 = vsub.s32 5, %v2276
    %v2278 = vrot.slane %v803, %v2277
    %v2279 = vlaneseq
    %v2280 = vshrl.u32 %v2279, 7
    %v2281 = vsub.s32 5, %v2280
    %v2282 = vrot.slane %v18, %v2281
    %2284 = vbcast.lane.b32.xlu0 %v2282, 256
    %v2285 = vpop.permute.xlu0 %2284
    %s2287 = sor.u32 256, 8
    %2288 = vbcast.lane.b32.xlu0 %v2282, %s2287
    %v2289 = vpop.permute.xlu0 %2288
    %s2291 = sor.u32 256, 16
    %2292 = vbcast.lane.b32.xlu0 %v2282, %s2291
    %v2293 = vpop.permute.xlu0 %2292
    %s2295 = sor.u32 256, 24
    %2296 = vbcast.lane.b32.xlu0 %v2282, %s2295
    %v2297 = vpop.permute.xlu0 %2296
    %v2298 = vlaneseq
    %v2299 = vshrl.u32 %v2298, 7
    %v2300 = vsub.s32 5, %v2299
    %v2301 = vrot.slane %v19, %v2300
    %2303 = vbcast.lane.b32.xlu0 %v2301, 256
    %v2304 = vpop.permute.xlu0 %2303
    %s2306 = sor.u32 256, 8
    %2307 = vbcast.lane.b32.xlu0 %v2301, %s2306
    %v2308 = vpop.permute.xlu0 %2307
    %s2310 = sor.u32 256, 16
    %2311 = vbcast.lane.b32.xlu0 %v2301, %s2310
    %v2312 = vpop.permute.xlu0 %2311
    %s2314 = sor.u32 256, 24
    %2315 = vbcast.lane.b32.xlu0 %v2301, %s2314
    %v2316 = vpop.permute.xlu0 %2315
    %v2317 = vlaneseq
    %v2318 = vshrl.u32 %v2317, 7
    %v2319 = vsub.s32 5, %v2318
    %v2320 = vrot.slane %v20, %v2319
    %2322 = vbcast.lane.b32.xlu0 %v2320, 256
    %v2323 = vpop.permute.xlu0 %2322
    %s2325 = sor.u32 256, 8
    %2326 = vbcast.lane.b32.xlu0 %v2320, %s2325
    %v2327 = vpop.permute.xlu0 %2326
    %s2329 = sor.u32 256, 16
    %2330 = vbcast.lane.b32.xlu0 %v2320, %s2329
    %v2331 = vpop.permute.xlu0 %2330
    %s2333 = sor.u32 256, 24
    %2334 = vbcast.lane.b32.xlu0 %v2320, %s2333
    %v2335 = vpop.permute.xlu0 %2334
    %v2336 = vlaneseq
    %v2337 = vshrl.u32 %v2336, 7
    %v2338 = vsub.s32 5, %v2337
    %v2339 = vrot.slane %v21, %v2338
    %2341 = vbcast.lane.b32.xlu0 %v2339, 256
    %v2342 = vpop.permute.xlu0 %2341
    %s2344 = sor.u32 256, 8
    %2345 = vbcast.lane.b32.xlu0 %v2339, %s2344
    %v2346 = vpop.permute.xlu0 %2345
    %s2348 = sor.u32 256, 16
    %2349 = vbcast.lane.b32.xlu0 %v2339, %s2348
    %v2350 = vpop.permute.xlu0 %2349
    %s2352 = sor.u32 256, 24
    %2353 = vbcast.lane.b32.xlu0 %v2339, %s2352
    %v2354 = vpop.permute.xlu0 %2353
    %v2355 = vlaneseq
    %v2356 = vshrl.u32 %v2355, 7
    %v2357 = vsub.s32 5, %v2356
    %v2358 = vrot.slane %v22, %v2357
    %2360 = vbcast.lane.b32.xlu0 %v2358, 256
    %v2361 = vpop.permute.xlu0 %2360
    %s2363 = sor.u32 256, 8
    %2364 = vbcast.lane.b32.xlu0 %v2358, %s2363
    %v2365 = vpop.permute.xlu0 %2364
    %s2367 = sor.u32 256, 16
    %2368 = vbcast.lane.b32.xlu0 %v2358, %s2367
    %v2369 = vpop.permute.xlu0 %2368
    %s2371 = sor.u32 256, 24
    %2372 = vbcast.lane.b32.xlu0 %v2358, %s2371
    %v2373 = vpop.permute.xlu0 %2372
    %v2374 = vlaneseq
    %v2375 = vshrl.u32 %v2374, 7
    %v2376 = vsub.s32 5, %v2375
    %v2377 = vrot.slane %v23, %v2376
    %2379 = vbcast.lane.b32.xlu0 %v2377, 256
    %v2380 = vpop.permute.xlu0 %2379
    %s2382 = sor.u32 256, 8
    %2383 = vbcast.lane.b32.xlu0 %v2377, %s2382
    %v2384 = vpop.permute.xlu0 %2383
    %s2386 = sor.u32 256, 16
    %2387 = vbcast.lane.b32.xlu0 %v2377, %s2386
    %v2388 = vpop.permute.xlu0 %2387
    %s2390 = sor.u32 256, 24
    %2391 = vbcast.lane.b32.xlu0 %v2377, %s2390
    %v2392 = vpop.permute.xlu0 %2391
    %v2393 = vlaneseq
    %v2394 = vshrl.u32 %v2393, 7
    %v2395 = vsub.s32 5, %v2394
    %v2396 = vrot.slane %v24, %v2395
    %2398 = vbcast.lane.b32.xlu0 %v2396, 256
    %v2399 = vpop.permute.xlu0 %2398
    %s2401 = sor.u32 256, 8
    %2402 = vbcast.lane.b32.xlu0 %v2396, %s2401
    %v2403 = vpop.permute.xlu0 %2402
    %s2405 = sor.u32 256, 16
    %2406 = vbcast.lane.b32.xlu0 %v2396, %s2405
    %v2407 = vpop.permute.xlu0 %2406
    %s2409 = sor.u32 256, 24
    %2410 = vbcast.lane.b32.xlu0 %v2396, %s2409
    %v2411 = vpop.permute.xlu0 %2410
    %v2412 = vlaneseq
    %v2413 = vshrl.u32 %v2412, 7
    %v2414 = vsub.s32 5, %v2413
    %v2415 = vrot.slane %v25, %v2414
    %2417 = vbcast.lane.b32.xlu0 %v2415, 256
    %v2418 = vpop.permute.xlu0 %2417
    %s2420 = sor.u32 256, 8
    %2421 = vbcast.lane.b32.xlu0 %v2415, %s2420
    %v2422 = vpop.permute.xlu0 %2421
    %s2424 = sor.u32 256, 16
    %2425 = vbcast.lane.b32.xlu0 %v2415, %s2424
    %v2426 = vpop.permute.xlu0 %2425
    %s2428 = sor.u32 256, 24
    %2429 = vbcast.lane.b32.xlu0 %v2415, %s2428
    %v2430 = vpop.permute.xlu0 %2429
    %v2463 = vmul.f32 %v2250, %v2285
    %v2464 = vmul.f32 %v2250, %v2289
    %v2465 = vmul.f32 %v2250, %v2293
    %v2466 = vmul.f32 %v2250, %v2297
    %v2467 = vmul.f32 %v2254, %v2304
    %v2468 = vmul.f32 %v2254, %v2308
    %v2469 = vmul.f32 %v2254, %v2312
    %v2470 = vmul.f32 %v2254, %v2316
    %v2471 = vmul.f32 %v2258, %v2323
    %v2472 = vmul.f32 %v2258, %v2327
    %v2473 = vmul.f32 %v2258, %v2331
    %v2474 = vmul.f32 %v2258, %v2335
    %v2475 = vmul.f32 %v2262, %v2342
    %v2476 = vmul.f32 %v2262, %v2346
    %v2477 = vmul.f32 %v2262, %v2350
    %v2478 = vmul.f32 %v2262, %v2354
    %v2479 = vmul.f32 %v2266, %v2361
    %v2480 = vmul.f32 %v2266, %v2365
    %v2481 = vmul.f32 %v2266, %v2369
    %v2482 = vmul.f32 %v2266, %v2373
    %v2483 = vmul.f32 %v2270, %v2380
    %v2484 = vmul.f32 %v2270, %v2384
    %v2485 = vmul.f32 %v2270, %v2388
    %v2486 = vmul.f32 %v2270, %v2392
    %v2487 = vmul.f32 %v2274, %v2399
    %v2488 = vmul.f32 %v2274, %v2403
    %v2489 = vmul.f32 %v2274, %v2407
    %v2490 = vmul.f32 %v2274, %v2411
    %v2491 = vmul.f32 %v2278, %v2418
    %v2492 = vmul.f32 %v2278, %v2422
    %v2493 = vmul.f32 %v2278, %v2426
    %v2494 = vmul.f32 %v2278, %v2430
    %v2495 = vadd.f32 %v2215, %v2463
    %v2496 = vadd.f32 %v2216, %v2464
    %v2497 = vadd.f32 %v2217, %v2465
    %v2498 = vadd.f32 %v2218, %v2466
    %v2499 = vadd.f32 %v2219, %v2467
    %v2500 = vadd.f32 %v2220, %v2468
    %v2501 = vadd.f32 %v2221, %v2469
    %v2502 = vadd.f32 %v2222, %v2470
    %v2503 = vadd.f32 %v2223, %v2471
    %v2504 = vadd.f32 %v2224, %v2472
    %v2505 = vadd.f32 %v2225, %v2473
    %v2506 = vadd.f32 %v2226, %v2474
    %v2507 = vadd.f32 %v2227, %v2475
    %v2508 = vadd.f32 %v2228, %v2476
    %v2509 = vadd.f32 %v2229, %v2477
    %v2510 = vadd.f32 %v2230, %v2478
    %v2511 = vadd.f32 %v2231, %v2479
    %v2512 = vadd.f32 %v2232, %v2480
    %v2513 = vadd.f32 %v2233, %v2481
    %v2514 = vadd.f32 %v2234, %v2482
    %v2515 = vadd.f32 %v2235, %v2483
    %v2516 = vadd.f32 %v2236, %v2484
    %v2517 = vadd.f32 %v2237, %v2485
    %v2518 = vadd.f32 %v2238, %v2486
    %v2519 = vadd.f32 %v2239, %v2487
    %v2520 = vadd.f32 %v2240, %v2488
    %v2521 = vadd.f32 %v2241, %v2489
    %v2522 = vadd.f32 %v2242, %v2490
    %v2523 = vadd.f32 %v2243, %v2491
    %v2524 = vadd.f32 %v2244, %v2492
    %v2525 = vadd.f32 %v2245, %v2493
    %v2526 = vadd.f32 %v2246, %v2494
    %v2527 = vlaneseq
    %v2528 = vshrl.u32 %v2527, 7
    %v2529 = vsub.s32 6, %v2528
    %v2530 = vrot.slane %v789, %v2529
    %v2531 = vlaneseq
    %v2532 = vshrl.u32 %v2531, 7
    %v2533 = vsub.s32 6, %v2532
    %v2534 = vrot.slane %v791, %v2533
    %v2535 = vlaneseq
    %v2536 = vshrl.u32 %v2535, 7
    %v2537 = vsub.s32 6, %v2536
    %v2538 = vrot.slane %v793, %v2537
    %v2539 = vlaneseq
    %v2540 = vshrl.u32 %v2539, 7
    %v2541 = vsub.s32 6, %v2540
    %v2542 = vrot.slane %v795, %v2541
    %v2543 = vlaneseq
    %v2544 = vshrl.u32 %v2543, 7
    %v2545 = vsub.s32 6, %v2544
    %v2546 = vrot.slane %v797, %v2545
    %v2547 = vlaneseq
    %v2548 = vshrl.u32 %v2547, 7
    %v2549 = vsub.s32 6, %v2548
    %v2550 = vrot.slane %v799, %v2549
    %v2551 = vlaneseq
    %v2552 = vshrl.u32 %v2551, 7
    %v2553 = vsub.s32 6, %v2552
    %v2554 = vrot.slane %v801, %v2553
    %v2555 = vlaneseq
    %v2556 = vshrl.u32 %v2555, 7
    %v2557 = vsub.s32 6, %v2556
    %v2558 = vrot.slane %v803, %v2557
    %v2559 = vlaneseq
    %v2560 = vshrl.u32 %v2559, 7
    %v2561 = vsub.s32 6, %v2560
    %v2562 = vrot.slane %v18, %v2561
    %2564 = vbcast.lane.b32.xlu0 %v2562, 256
    %v2565 = vpop.permute.xlu0 %2564
    %s2567 = sor.u32 256, 8
    %2568 = vbcast.lane.b32.xlu0 %v2562, %s2567
    %v2569 = vpop.permute.xlu0 %2568
    %s2571 = sor.u32 256, 16
    %2572 = vbcast.lane.b32.xlu0 %v2562, %s2571
    %v2573 = vpop.permute.xlu0 %2572
    %s2575 = sor.u32 256, 24
    %2576 = vbcast.lane.b32.xlu0 %v2562, %s2575
    %v2577 = vpop.permute.xlu0 %2576
    %v2578 = vlaneseq
    %v2579 = vshrl.u32 %v2578, 7
    %v2580 = vsub.s32 6, %v2579
    %v2581 = vrot.slane %v19, %v2580
    %2583 = vbcast.lane.b32.xlu0 %v2581, 256
    %v2584 = vpop.permute.xlu0 %2583
    %s2586 = sor.u32 256, 8
    %2587 = vbcast.lane.b32.xlu0 %v2581, %s2586
    %v2588 = vpop.permute.xlu0 %2587
    %s2590 = sor.u32 256, 16
    %2591 = vbcast.lane.b32.xlu0 %v2581, %s2590
    %v2592 = vpop.permute.xlu0 %2591
    %s2594 = sor.u32 256, 24
    %2595 = vbcast.lane.b32.xlu0 %v2581, %s2594
    %v2596 = vpop.permute.xlu0 %2595
    %v2597 = vlaneseq
    %v2598 = vshrl.u32 %v2597, 7
    %v2599 = vsub.s32 6, %v2598
    %v2600 = vrot.slane %v20, %v2599
    %2602 = vbcast.lane.b32.xlu0 %v2600, 256
    %v2603 = vpop.permute.xlu0 %2602
    %s2605 = sor.u32 256, 8
    %2606 = vbcast.lane.b32.xlu0 %v2600, %s2605
    %v2607 = vpop.permute.xlu0 %2606
    %s2609 = sor.u32 256, 16
    %2610 = vbcast.lane.b32.xlu0 %v2600, %s2609
    %v2611 = vpop.permute.xlu0 %2610
    %s2613 = sor.u32 256, 24
    %2614 = vbcast.lane.b32.xlu0 %v2600, %s2613
    %v2615 = vpop.permute.xlu0 %2614
    %v2616 = vlaneseq
    %v2617 = vshrl.u32 %v2616, 7
    %v2618 = vsub.s32 6, %v2617
    %v2619 = vrot.slane %v21, %v2618
    %2621 = vbcast.lane.b32.xlu0 %v2619, 256
    %v2622 = vpop.permute.xlu0 %2621
    %s2624 = sor.u32 256, 8
    %2625 = vbcast.lane.b32.xlu0 %v2619, %s2624
    %v2626 = vpop.permute.xlu0 %2625
    %s2628 = sor.u32 256, 16
    %2629 = vbcast.lane.b32.xlu0 %v2619, %s2628
    %v2630 = vpop.permute.xlu0 %2629
    %s2632 = sor.u32 256, 24
    %2633 = vbcast.lane.b32.xlu0 %v2619, %s2632
    %v2634 = vpop.permute.xlu0 %2633
    %v2635 = vlaneseq
    %v2636 = vshrl.u32 %v2635, 7
    %v2637 = vsub.s32 6, %v2636
    %v2638 = vrot.slane %v22, %v2637
    %2640 = vbcast.lane.b32.xlu0 %v2638, 256
    %v2641 = vpop.permute.xlu0 %2640
    %s2643 = sor.u32 256, 8
    %2644 = vbcast.lane.b32.xlu0 %v2638, %s2643
    %v2645 = vpop.permute.xlu0 %2644
    %s2647 = sor.u32 256, 16
    %2648 = vbcast.lane.b32.xlu0 %v2638, %s2647
    %v2649 = vpop.permute.xlu0 %2648
    %s2651 = sor.u32 256, 24
    %2652 = vbcast.lane.b32.xlu0 %v2638, %s2651
    %v2653 = vpop.permute.xlu0 %2652
    %v2654 = vlaneseq
    %v2655 = vshrl.u32 %v2654, 7
    %v2656 = vsub.s32 6, %v2655
    %v2657 = vrot.slane %v23, %v2656
    %2659 = vbcast.lane.b32.xlu0 %v2657, 256
    %v2660 = vpop.permute.xlu0 %2659
    %s2662 = sor.u32 256, 8
    %2663 = vbcast.lane.b32.xlu0 %v2657, %s2662
    %v2664 = vpop.permute.xlu0 %2663
    %s2666 = sor.u32 256, 16
    %2667 = vbcast.lane.b32.xlu0 %v2657, %s2666
    %v2668 = vpop.permute.xlu0 %2667
    %s2670 = sor.u32 256, 24
    %2671 = vbcast.lane.b32.xlu0 %v2657, %s2670
    %v2672 = vpop.permute.xlu0 %2671
    %v2673 = vlaneseq
    %v2674 = vshrl.u32 %v2673, 7
    %v2675 = vsub.s32 6, %v2674
    %v2676 = vrot.slane %v24, %v2675
    %2678 = vbcast.lane.b32.xlu0 %v2676, 256
    %v2679 = vpop.permute.xlu0 %2678
    %s2681 = sor.u32 256, 8
    %2682 = vbcast.lane.b32.xlu0 %v2676, %s2681
    %v2683 = vpop.permute.xlu0 %2682
    %s2685 = sor.u32 256, 16
    %2686 = vbcast.lane.b32.xlu0 %v2676, %s2685
    %v2687 = vpop.permute.xlu0 %2686
    %s2689 = sor.u32 256, 24
    %2690 = vbcast.lane.b32.xlu0 %v2676, %s2689
    %v2691 = vpop.permute.xlu0 %2690
    %v2692 = vlaneseq
    %v2693 = vshrl.u32 %v2692, 7
    %v2694 = vsub.s32 6, %v2693
    %v2695 = vrot.slane %v25, %v2694
    %2697 = vbcast.lane.b32.xlu0 %v2695, 256
    %v2698 = vpop.permute.xlu0 %2697
    %s2700 = sor.u32 256, 8
    %2701 = vbcast.lane.b32.xlu0 %v2695, %s2700
    %v2702 = vpop.permute.xlu0 %2701
    %s2704 = sor.u32 256, 16
    %2705 = vbcast.lane.b32.xlu0 %v2695, %s2704
    %v2706 = vpop.permute.xlu0 %2705
    %s2708 = sor.u32 256, 24
    %2709 = vbcast.lane.b32.xlu0 %v2695, %s2708
    %v2710 = vpop.permute.xlu0 %2709
    %v2743 = vmul.f32 %v2530, %v2565
    %v2744 = vmul.f32 %v2530, %v2569
    %v2745 = vmul.f32 %v2530, %v2573
    %v2746 = vmul.f32 %v2530, %v2577
    %v2747 = vmul.f32 %v2534, %v2584
    %v2748 = vmul.f32 %v2534, %v2588
    %v2749 = vmul.f32 %v2534, %v2592
    %v2750 = vmul.f32 %v2534, %v2596
    %v2751 = vmul.f32 %v2538, %v2603
    %v2752 = vmul.f32 %v2538, %v2607
    %v2753 = vmul.f32 %v2538, %v2611
    %v2754 = vmul.f32 %v2538, %v2615
    %v2755 = vmul.f32 %v2542, %v2622
    %v2756 = vmul.f32 %v2542, %v2626
    %v2757 = vmul.f32 %v2542, %v2630
    %v2758 = vmul.f32 %v2542, %v2634
    %v2759 = vmul.f32 %v2546, %v2641
    %v2760 = vmul.f32 %v2546, %v2645
    %v2761 = vmul.f32 %v2546, %v2649
    %v2762 = vmul.f32 %v2546, %v2653
    %v2763 = vmul.f32 %v2550, %v2660
    %v2764 = vmul.f32 %v2550, %v2664
    %v2765 = vmul.f32 %v2550, %v2668
    %v2766 = vmul.f32 %v2550, %v2672
    %v2767 = vmul.f32 %v2554, %v2679
    %v2768 = vmul.f32 %v2554, %v2683
    %v2769 = vmul.f32 %v2554, %v2687
    %v2770 = vmul.f32 %v2554, %v2691
    %v2771 = vmul.f32 %v2558, %v2698
    %v2772 = vmul.f32 %v2558, %v2702
    %v2773 = vmul.f32 %v2558, %v2706
    %v2774 = vmul.f32 %v2558, %v2710
    %v2775 = vadd.f32 %v2495, %v2743
    %v2776 = vadd.f32 %v2496, %v2744
    %v2777 = vadd.f32 %v2497, %v2745
    %v2778 = vadd.f32 %v2498, %v2746
    %v2779 = vadd.f32 %v2499, %v2747
    %v2780 = vadd.f32 %v2500, %v2748
    %v2781 = vadd.f32 %v2501, %v2749
    %v2782 = vadd.f32 %v2502, %v2750
    %v2783 = vadd.f32 %v2503, %v2751
    %v2784 = vadd.f32 %v2504, %v2752
    %v2785 = vadd.f32 %v2505, %v2753
    %v2786 = vadd.f32 %v2506, %v2754
    %v2787 = vadd.f32 %v2507, %v2755
    %v2788 = vadd.f32 %v2508, %v2756
    %v2789 = vadd.f32 %v2509, %v2757
    %v2790 = vadd.f32 %v2510, %v2758
    %v2791 = vadd.f32 %v2511, %v2759
    %v2792 = vadd.f32 %v2512, %v2760
    %v2793 = vadd.f32 %v2513, %v2761
    %v2794 = vadd.f32 %v2514, %v2762
    %v2795 = vadd.f32 %v2515, %v2763
    %v2796 = vadd.f32 %v2516, %v2764
    %v2797 = vadd.f32 %v2517, %v2765
    %v2798 = vadd.f32 %v2518, %v2766
    %v2799 = vadd.f32 %v2519, %v2767
    %v2800 = vadd.f32 %v2520, %v2768
    %v2801 = vadd.f32 %v2521, %v2769
    %v2802 = vadd.f32 %v2522, %v2770
    %v2803 = vadd.f32 %v2523, %v2771
    %v2804 = vadd.f32 %v2524, %v2772
    %v2805 = vadd.f32 %v2525, %v2773
    %v2806 = vadd.f32 %v2526, %v2774
    %v2807 = vlaneseq
    %v2808 = vshrl.u32 %v2807, 7
    %v2809 = vsub.s32 7, %v2808
    %v2810 = vrot.slane %v789, %v2809
    %v2811 = vlaneseq
    %v2812 = vshrl.u32 %v2811, 7
    %v2813 = vsub.s32 7, %v2812
    %v2814 = vrot.slane %v791, %v2813
    %v2815 = vlaneseq
    %v2816 = vshrl.u32 %v2815, 7
    %v2817 = vsub.s32 7, %v2816
    %v2818 = vrot.slane %v793, %v2817
    %v2819 = vlaneseq
    %v2820 = vshrl.u32 %v2819, 7
    %v2821 = vsub.s32 7, %v2820
    %v2822 = vrot.slane %v795, %v2821
    %v2823 = vlaneseq
    %v2824 = vshrl.u32 %v2823, 7
    %v2825 = vsub.s32 7, %v2824
    %v2826 = vrot.slane %v797, %v2825
    %v2827 = vlaneseq
    %v2828 = vshrl.u32 %v2827, 7
    %v2829 = vsub.s32 7, %v2828
    %v2830 = vrot.slane %v799, %v2829
    %v2831 = vlaneseq
    %v2832 = vshrl.u32 %v2831, 7
    %v2833 = vsub.s32 7, %v2832
    %v2834 = vrot.slane %v801, %v2833
    %v2835 = vlaneseq
    %v2836 = vshrl.u32 %v2835, 7
    %v2837 = vsub.s32 7, %v2836
    %v2838 = vrot.slane %v803, %v2837
    %v2839 = vlaneseq
    %v2840 = vshrl.u32 %v2839, 7
    %v2841 = vsub.s32 7, %v2840
    %v2842 = vrot.slane %v18, %v2841
    %2844 = vbcast.lane.b32.xlu0 %v2842, 256
    %v2845 = vpop.permute.xlu0 %2844
    %s2847 = sor.u32 256, 8
    %2848 = vbcast.lane.b32.xlu0 %v2842, %s2847
    %v2849 = vpop.permute.xlu0 %2848
    %s2851 = sor.u32 256, 16
    %2852 = vbcast.lane.b32.xlu0 %v2842, %s2851
    %v2853 = vpop.permute.xlu0 %2852
    %s2855 = sor.u32 256, 24
    %2856 = vbcast.lane.b32.xlu0 %v2842, %s2855
    %v2857 = vpop.permute.xlu0 %2856
    %v2858 = vlaneseq
    %v2859 = vshrl.u32 %v2858, 7
    %v2860 = vsub.s32 7, %v2859
    %v2861 = vrot.slane %v19, %v2860
    %2863 = vbcast.lane.b32.xlu0 %v2861, 256
    %v2864 = vpop.permute.xlu0 %2863
    %s2866 = sor.u32 256, 8
    %2867 = vbcast.lane.b32.xlu0 %v2861, %s2866
    %v2868 = vpop.permute.xlu0 %2867
    %s2870 = sor.u32 256, 16
    %2871 = vbcast.lane.b32.xlu0 %v2861, %s2870
    %v2872 = vpop.permute.xlu0 %2871
    %s2874 = sor.u32 256, 24
    %2875 = vbcast.lane.b32.xlu0 %v2861, %s2874
    %v2876 = vpop.permute.xlu0 %2875
    %v2877 = vlaneseq
    %v2878 = vshrl.u32 %v2877, 7
    %v2879 = vsub.s32 7, %v2878
    %v2880 = vrot.slane %v20, %v2879
    %2882 = vbcast.lane.b32.xlu0 %v2880, 256
    %v2883 = vpop.permute.xlu0 %2882
    %s2885 = sor.u32 256, 8
    %2886 = vbcast.lane.b32.xlu0 %v2880, %s2885
    %v2887 = vpop.permute.xlu0 %2886
    %s2889 = sor.u32 256, 16
    %2890 = vbcast.lane.b32.xlu0 %v2880, %s2889
    %v2891 = vpop.permute.xlu0 %2890
    %s2893 = sor.u32 256, 24
    %2894 = vbcast.lane.b32.xlu0 %v2880, %s2893
    %v2895 = vpop.permute.xlu0 %2894
    %v2896 = vlaneseq
    %v2897 = vshrl.u32 %v2896, 7
    %v2898 = vsub.s32 7, %v2897
    %v2899 = vrot.slane %v21, %v2898
    %2901 = vbcast.lane.b32.xlu0 %v2899, 256
    %v2902 = vpop.permute.xlu0 %2901
    %s2904 = sor.u32 256, 8
    %2905 = vbcast.lane.b32.xlu0 %v2899, %s2904
    %v2906 = vpop.permute.xlu0 %2905
    %s2908 = sor.u32 256, 16
    %2909 = vbcast.lane.b32.xlu0 %v2899, %s2908
    %v2910 = vpop.permute.xlu0 %2909
    %s2912 = sor.u32 256, 24
    %2913 = vbcast.lane.b32.xlu0 %v2899, %s2912
    %v2914 = vpop.permute.xlu0 %2913
    %v2915 = vlaneseq
    %v2916 = vshrl.u32 %v2915, 7
    %v2917 = vsub.s32 7, %v2916
    %v2918 = vrot.slane %v22, %v2917
    %2920 = vbcast.lane.b32.xlu0 %v2918, 256
    %v2921 = vpop.permute.xlu0 %2920
    %s2923 = sor.u32 256, 8
    %2924 = vbcast.lane.b32.xlu0 %v2918, %s2923
    %v2925 = vpop.permute.xlu0 %2924
    %s2927 = sor.u32 256, 16
    %2928 = vbcast.lane.b32.xlu0 %v2918, %s2927
    %v2929 = vpop.permute.xlu0 %2928
    %s2931 = sor.u32 256, 24
    %2932 = vbcast.lane.b32.xlu0 %v2918, %s2931
    %v2933 = vpop.permute.xlu0 %2932
    %v2934 = vlaneseq
    %v2935 = vshrl.u32 %v2934, 7
    %v2936 = vsub.s32 7, %v2935
    %v2937 = vrot.slane %v23, %v2936
    %2939 = vbcast.lane.b32.xlu0 %v2937, 256
    %v2940 = vpop.permute.xlu0 %2939
    %s2942 = sor.u32 256, 8
    %2943 = vbcast.lane.b32.xlu0 %v2937, %s2942
    %v2944 = vpop.permute.xlu0 %2943
    %s2946 = sor.u32 256, 16
    %2947 = vbcast.lane.b32.xlu0 %v2937, %s2946
    %v2948 = vpop.permute.xlu0 %2947
    %s2950 = sor.u32 256, 24
    %2951 = vbcast.lane.b32.xlu0 %v2937, %s2950
    %v2952 = vpop.permute.xlu0 %2951
    %v2953 = vlaneseq
    %v2954 = vshrl.u32 %v2953, 7
    %v2955 = vsub.s32 7, %v2954
    %v2956 = vrot.slane %v24, %v2955
    %2958 = vbcast.lane.b32.xlu0 %v2956, 256
    %v2959 = vpop.permute.xlu0 %2958
    %s2961 = sor.u32 256, 8
    %2962 = vbcast.lane.b32.xlu0 %v2956, %s2961
    %v2963 = vpop.permute.xlu0 %2962
    %s2965 = sor.u32 256, 16
    %2966 = vbcast.lane.b32.xlu0 %v2956, %s2965
    %v2967 = vpop.permute.xlu0 %2966
    %s2969 = sor.u32 256, 24
    %2970 = vbcast.lane.b32.xlu0 %v2956, %s2969
    %v2971 = vpop.permute.xlu0 %2970
    %v2972 = vlaneseq
    %v2973 = vshrl.u32 %v2972, 7
    %v2974 = vsub.s32 7, %v2973
    %v2975 = vrot.slane %v25, %v2974
    %2977 = vbcast.lane.b32.xlu0 %v2975, 256
    %v2978 = vpop.permute.xlu0 %2977
    %s2980 = sor.u32 256, 8
    %2981 = vbcast.lane.b32.xlu0 %v2975, %s2980
    %v2982 = vpop.permute.xlu0 %2981
    %s2984 = sor.u32 256, 16
    %2985 = vbcast.lane.b32.xlu0 %v2975, %s2984
    %v2986 = vpop.permute.xlu0 %2985
    %s2988 = sor.u32 256, 24
    %2989 = vbcast.lane.b32.xlu0 %v2975, %s2988
    %v2990 = vpop.permute.xlu0 %2989
    %v3023 = vmul.f32 %v2810, %v2845
    %v3024 = vmul.f32 %v2810, %v2849
    %v3025 = vmul.f32 %v2810, %v2853
    %v3026 = vmul.f32 %v2810, %v2857
    %v3027 = vmul.f32 %v2814, %v2864
    %v3028 = vmul.f32 %v2814, %v2868
    %v3029 = vmul.f32 %v2814, %v2872
    %v3030 = vmul.f32 %v2814, %v2876
    %v3031 = vmul.f32 %v2818, %v2883
    %v3032 = vmul.f32 %v2818, %v2887
    %v3033 = vmul.f32 %v2818, %v2891
    %v3034 = vmul.f32 %v2818, %v2895
    %v3035 = vmul.f32 %v2822, %v2902
    %v3036 = vmul.f32 %v2822, %v2906
    %v3037 = vmul.f32 %v2822, %v2910
    %v3038 = vmul.f32 %v2822, %v2914
    %v3039 = vmul.f32 %v2826, %v2921
    %v3040 = vmul.f32 %v2826, %v2925
    %v3041 = vmul.f32 %v2826, %v2929
    %v3042 = vmul.f32 %v2826, %v2933
    %v3043 = vmul.f32 %v2830, %v2940
    %v3044 = vmul.f32 %v2830, %v2944
    %v3045 = vmul.f32 %v2830, %v2948
    %v3046 = vmul.f32 %v2830, %v2952
    %v3047 = vmul.f32 %v2834, %v2959
    %v3048 = vmul.f32 %v2834, %v2963
    %v3049 = vmul.f32 %v2834, %v2967
    %v3050 = vmul.f32 %v2834, %v2971
    %v3051 = vmul.f32 %v2838, %v2978
    %v3052 = vmul.f32 %v2838, %v2982
    %v3053 = vmul.f32 %v2838, %v2986
    %v3054 = vmul.f32 %v2838, %v2990
    %v3055 = vadd.f32 %v2775, %v3023
    %v3056 = vadd.f32 %v2776, %v3024
    %v3057 = vadd.f32 %v2777, %v3025
    %v3058 = vadd.f32 %v2778, %v3026
    %v3059 = vadd.f32 %v2779, %v3027
    %v3060 = vadd.f32 %v2780, %v3028
    %v3061 = vadd.f32 %v2781, %v3029
    %v3062 = vadd.f32 %v2782, %v3030
    %v3063 = vadd.f32 %v2783, %v3031
    %v3064 = vadd.f32 %v2784, %v3032
    %v3065 = vadd.f32 %v2785, %v3033
    %v3066 = vadd.f32 %v2786, %v3034
    %v3067 = vadd.f32 %v2787, %v3035
    %v3068 = vadd.f32 %v2788, %v3036
    %v3069 = vadd.f32 %v2789, %v3037
    %v3070 = vadd.f32 %v2790, %v3038
    %v3071 = vadd.f32 %v2791, %v3039
    %v3072 = vadd.f32 %v2792, %v3040
    %v3073 = vadd.f32 %v2793, %v3041
    %v3074 = vadd.f32 %v2794, %v3042
    %v3075 = vadd.f32 %v2795, %v3043
    %v3076 = vadd.f32 %v2796, %v3044
    %v3077 = vadd.f32 %v2797, %v3045
    %v3078 = vadd.f32 %v2798, %v3046
    %v3079 = vadd.f32 %v2799, %v3047
    %v3080 = vadd.f32 %v2800, %v3048
    %v3081 = vadd.f32 %v2801, %v3049
    %v3082 = vadd.f32 %v2802, %v3050
    %v3083 = vadd.f32 %v2803, %v3051
    %v3084 = vadd.f32 %v2804, %v3052
    %v3085 = vadd.f32 %v2805, %v3053
    %v3086 = vadd.f32 %v2806, %v3054
    %v3087 = vrcp.pop %v878
    %v3088 = vmul.f32 1.0, %v3087
    %v3090 = vlaneseq
    %v3091 = vshrl.u32 %v3090, 7
    %v3092 = vsub.s32 0, %v3091
    %v3093 = vrot.slane %v3088, %v3092
    %v3094 = vlaneseq
    %v3095 = vshrl.u32 %v3094, 7
    %v3096 = vsub.s32 1, %v3095
    %v3097 = vrot.slane %v3088, %v3096
    %v3098 = vlaneseq
    %v3099 = vshrl.u32 %v3098, 7
    %v3100 = vsub.s32 2, %v3099
    %v3101 = vrot.slane %v3088, %v3100
    %v3102 = vlaneseq
    %v3103 = vshrl.u32 %v3102, 7
    %v3104 = vsub.s32 3, %v3103
    %v3105 = vrot.slane %v3088, %v3104
    %v3106 = vlaneseq
    %v3107 = vshrl.u32 %v3106, 7
    %v3108 = vsub.s32 4, %v3107
    %v3109 = vrot.slane %v3088, %v3108
    %v3110 = vlaneseq
    %v3111 = vshrl.u32 %v3110, 7
    %v3112 = vsub.s32 5, %v3111
    %v3113 = vrot.slane %v3088, %v3112
    %v3114 = vlaneseq
    %v3115 = vshrl.u32 %v3114, 7
    %v3116 = vsub.s32 6, %v3115
    %v3117 = vrot.slane %v3088, %v3116
    %v3118 = vlaneseq
    %v3119 = vshrl.u32 %v3118, 7
    %v3120 = vsub.s32 7, %v3119
    %v3121 = vrot.slane %v3088, %v3120
    %v3130 = vmul.f32 %v3055, %v3093
    %v3131 = vmul.f32 %v3056, %v3093
    %v3132 = vmul.f32 %v3057, %v3093
    %v3133 = vmul.f32 %v3058, %v3093
    %v3134 = vmul.f32 %v3059, %v3097
    %v3135 = vmul.f32 %v3060, %v3097
    %v3136 = vmul.f32 %v3061, %v3097
    %v3137 = vmul.f32 %v3062, %v3097
    %v3138 = vmul.f32 %v3063, %v3101
    %v3139 = vmul.f32 %v3064, %v3101
    %v3140 = vmul.f32 %v3065, %v3101
    %v3141 = vmul.f32 %v3066, %v3101
    %v3142 = vmul.f32 %v3067, %v3105
    %v3143 = vmul.f32 %v3068, %v3105
    %v3144 = vmul.f32 %v3069, %v3105
    %v3145 = vmul.f32 %v3070, %v3105
    %v3146 = vmul.f32 %v3071, %v3109
    %v3147 = vmul.f32 %v3072, %v3109
    %v3148 = vmul.f32 %v3073, %v3109
    %v3149 = vmul.f32 %v3074, %v3109
    %v3150 = vmul.f32 %v3075, %v3113
    %v3151 = vmul.f32 %v3076, %v3113
    %v3152 = vmul.f32 %v3077, %v3113
    %v3153 = vmul.f32 %v3078, %v3113
    %v3154 = vmul.f32 %v3079, %v3117
    %v3155 = vmul.f32 %v3080, %v3117
    %v3156 = vmul.f32 %v3081, %v3117
    %v3157 = vmul.f32 %v3082, %v3117
    %v3158 = vmul.f32 %v3083, %v3121
    %v3159 = vmul.f32 %v3084, %v3121
    %v3160 = vmul.f32 %v3085, %v3121
    %v3161 = vmul.f32 %v3086, %v3121
    %3194 = vset.pattern.permute.xlu0 0
    %3195 = vperm.xlu0 %3194, %v3130
    %v3196 = vpop.permute.xlu0 %3195
    %3197 = vset.pattern.permute.xlu0 0
    %3198 = vperm.xlu0 %3197, %v3131
    %v3199 = vpop.permute.xlu0 %3198
    %3200 = vset.pattern.permute.xlu0 0
    %3201 = vperm.xlu0 %3200, %v3132
    %v3202 = vpop.permute.xlu0 %3201
    %3203 = vset.pattern.permute.xlu0 0
    %3204 = vperm.xlu0 %3203, %v3133
    %v3205 = vpop.permute.xlu0 %3204
    %3206 = vset.pattern.permute.xlu0 0
    %3207 = vperm.xlu0 %3206, %v3134
    %v3208 = vpop.permute.xlu0 %3207
    %3209 = vset.pattern.permute.xlu0 0
    %3210 = vperm.xlu0 %3209, %v3135
    %v3211 = vpop.permute.xlu0 %3210
    %3212 = vset.pattern.permute.xlu0 0
    %3213 = vperm.xlu0 %3212, %v3136
    %v3214 = vpop.permute.xlu0 %3213
    %3215 = vset.pattern.permute.xlu0 0
    %3216 = vperm.xlu0 %3215, %v3137
    %v3217 = vpop.permute.xlu0 %3216
    %3218 = vset.pattern.permute.xlu0 0
    %3219 = vperm.xlu0 %3218, %v3138
    %v3220 = vpop.permute.xlu0 %3219
    %3221 = vset.pattern.permute.xlu0 0
    %3222 = vperm.xlu0 %3221, %v3139
    %v3223 = vpop.permute.xlu0 %3222
    %3224 = vset.pattern.permute.xlu0 0
    %3225 = vperm.xlu0 %3224, %v3140
    %v3226 = vpop.permute.xlu0 %3225
    %3227 = vset.pattern.permute.xlu0 0
    %3228 = vperm.xlu0 %3227, %v3141
    %v3229 = vpop.permute.xlu0 %3228
    %3230 = vset.pattern.permute.xlu0 0
    %3231 = vperm.xlu0 %3230, %v3142
    %v3232 = vpop.permute.xlu0 %3231
    %3233 = vset.pattern.permute.xlu0 0
    %3234 = vperm.xlu0 %3233, %v3143
    %v3235 = vpop.permute.xlu0 %3234
    %3236 = vset.pattern.permute.xlu0 0
    %3237 = vperm.xlu0 %3236, %v3144
    %v3238 = vpop.permute.xlu0 %3237
    %3239 = vset.pattern.permute.xlu0 0
    %3240 = vperm.xlu0 %3239, %v3145
    %v3241 = vpop.permute.xlu0 %3240
    %3242 = vset.pattern.permute.xlu0 0
    %3243 = vperm.xlu0 %3242, %v3146
    %v3244 = vpop.permute.xlu0 %3243
    %3245 = vset.pattern.permute.xlu0 0
    %3246 = vperm.xlu0 %3245, %v3147
    %v3247 = vpop.permute.xlu0 %3246
    %3248 = vset.pattern.permute.xlu0 0
    %3249 = vperm.xlu0 %3248, %v3148
    %v3250 = vpop.permute.xlu0 %3249
    %3251 = vset.pattern.permute.xlu0 0
    %3252 = vperm.xlu0 %3251, %v3149
    %v3253 = vpop.permute.xlu0 %3252
    %3254 = vset.pattern.permute.xlu0 0
    %3255 = vperm.xlu0 %3254, %v3150
    %v3256 = vpop.permute.xlu0 %3255
    %3257 = vset.pattern.permute.xlu0 0
    %3258 = vperm.xlu0 %3257, %v3151
    %v3259 = vpop.permute.xlu0 %3258
    %3260 = vset.pattern.permute.xlu0 0
    %3261 = vperm.xlu0 %3260, %v3152
    %v3262 = vpop.permute.xlu0 %3261
    %3263 = vset.pattern.permute.xlu0 0
    %3264 = vperm.xlu0 %3263, %v3153
    %v3265 = vpop.permute.xlu0 %3264
    %3266 = vset.pattern.permute.xlu0 0
    %3267 = vperm.xlu0 %3266, %v3154
    %v3268 = vpop.permute.xlu0 %3267
    %3269 = vset.pattern.permute.xlu0 0
    %3270 = vperm.xlu0 %3269, %v3155
    %v3271 = vpop.permute.xlu0 %3270
    %3272 = vset.pattern.permute.xlu0 0
    %3273 = vperm.xlu0 %3272, %v3156
    %v3274 = vpop.permute.xlu0 %3273
    %3275 = vset.pattern.permute.xlu0 0
    %3276 = vperm.xlu0 %3275, %v3157
    %v3277 = vpop.permute.xlu0 %3276
    %3278 = vset.pattern.permute.xlu0 0
    %3279 = vperm.xlu0 %3278, %v3158
    %v3280 = vpop.permute.xlu0 %3279
    %3281 = vset.pattern.permute.xlu0 0
    %3282 = vperm.xlu0 %3281, %v3159
    %v3283 = vpop.permute.xlu0 %3282
    %3284 = vset.pattern.permute.xlu0 0
    %3285 = vperm.xlu0 %3284, %v3160
    %v3286 = vpop.permute.xlu0 %3285
    %3287 = vset.pattern.permute.xlu0 0
    %3288 = vperm.xlu0 %3287, %v3161
    %v3289 = vpop.permute.xlu0 %3288
    %v3290 = vlaneseq
    %v3291 = vshrl.u32 %v3290, 7
    %v3292 = vsub.s32 %v687, %v3291
    %v3293 = vrot.slane %v3196, %v3292
    %v3294 = vadd.s32 %v687, 4294967288
    %v3295 = vlaneseq
    %v3296 = vshrl.u32 %v3295, 7
    %v3297 = vsub.s32 %v3294, %v3296
    %v3298 = vrot.slane %v3199, %v3297
    %vm3299 = vcmask 130112
    %v3300 = vsel %vm3299, %v3298, %v3293
    %v3301 = vadd.s32 %v687, 4294967280
    %v3302 = vlaneseq
    %v3303 = vshrl.u32 %v3302, 7
    %v3304 = vsub.s32 %v3301, %v3303
    %v3305 = vrot.slane %v3202, %v3304
    %vm3306 = vcmask 195712
    %v3307 = vsel %vm3306, %v3305, %v3300
    %v3308 = vadd.s32 %v687, 4294967272
    %v3309 = vlaneseq
    %v3310 = vshrl.u32 %v3309, 7
    %v3311 = vsub.s32 %v3308, %v3310
    %v3312 = vrot.slane %v3205, %v3311
    %vm3313 = vcmask 261312
    %v3314 = vsel %vm3313, %v3312, %v3307
    %v3315 = vlaneseq
    %v3316 = vshrl.u32 %v3315, 7
    %v3317 = vsub.s32 %v687, %v3316
    %v3318 = vrot.slane %v3208, %v3317
    %v3319 = vlaneseq
    %v3320 = vshrl.u32 %v3319, 7
    %v3321 = vsub.s32 %v3294, %v3320
    %v3322 = vrot.slane %v3211, %v3321
    %v3323 = vsel %vm3299, %v3322, %v3318
    %v3324 = vlaneseq
    %v3325 = vshrl.u32 %v3324, 7
    %v3326 = vsub.s32 %v3301, %v3325
    %v3327 = vrot.slane %v3214, %v3326
    %v3328 = vsel %vm3306, %v3327, %v3323
    %v3329 = vlaneseq
    %v3330 = vshrl.u32 %v3329, 7
    %v3331 = vsub.s32 %v3308, %v3330
    %v3332 = vrot.slane %v3217, %v3331
    %v3333 = vsel %vm3313, %v3332, %v3328
    %v3334 = vlaneseq
    %v3335 = vshrl.u32 %v3334, 7
    %v3336 = vsub.s32 %v687, %v3335
    %v3337 = vrot.slane %v3220, %v3336
    %v3338 = vlaneseq
    %v3339 = vshrl.u32 %v3338, 7
    %v3340 = vsub.s32 %v3294, %v3339
    %v3341 = vrot.slane %v3223, %v3340
    %v3342 = vsel %vm3299, %v3341, %v3337
    %v3343 = vlaneseq
    %v3344 = vshrl.u32 %v3343, 7
    %v3345 = vsub.s32 %v3301, %v3344
    %v3346 = vrot.slane %v3226, %v3345
    %v3347 = vsel %vm3306, %v3346, %v3342
    %v3348 = vlaneseq
    %v3349 = vshrl.u32 %v3348, 7
    %v3350 = vsub.s32 %v3308, %v3349
    %v3351 = vrot.slane %v3229, %v3350
    %v3352 = vsel %vm3313, %v3351, %v3347
    %v3353 = vlaneseq
    %v3354 = vshrl.u32 %v3353, 7
    %v3355 = vsub.s32 %v687, %v3354
    %v3356 = vrot.slane %v3232, %v3355
    %v3357 = vlaneseq
    %v3358 = vshrl.u32 %v3357, 7
    %v3359 = vsub.s32 %v3294, %v3358
    %v3360 = vrot.slane %v3235, %v3359
    %v3361 = vsel %vm3299, %v3360, %v3356
    %v3362 = vlaneseq
    %v3363 = vshrl.u32 %v3362, 7
    %v3364 = vsub.s32 %v3301, %v3363
    %v3365 = vrot.slane %v3238, %v3364
    %v3366 = vsel %vm3306, %v3365, %v3361
    %v3367 = vlaneseq
    %v3368 = vshrl.u32 %v3367, 7
    %v3369 = vsub.s32 %v3308, %v3368
    %v3370 = vrot.slane %v3241, %v3369
    %v3371 = vsel %vm3313, %v3370, %v3366
    %v3372 = vlaneseq
    %v3373 = vshrl.u32 %v3372, 7
    %v3374 = vsub.s32 %v687, %v3373
    %v3375 = vrot.slane %v3244, %v3374
    %v3376 = vlaneseq
    %v3377 = vshrl.u32 %v3376, 7
    %v3378 = vsub.s32 %v3294, %v3377
    %v3379 = vrot.slane %v3247, %v3378
    %v3380 = vsel %vm3299, %v3379, %v3375
    %v3381 = vlaneseq
    %v3382 = vshrl.u32 %v3381, 7
    %v3383 = vsub.s32 %v3301, %v3382
    %v3384 = vrot.slane %v3250, %v3383
    %v3385 = vsel %vm3306, %v3384, %v3380
    %v3386 = vlaneseq
    %v3387 = vshrl.u32 %v3386, 7
    %v3388 = vsub.s32 %v3308, %v3387
    %v3389 = vrot.slane %v3253, %v3388
    %v3390 = vsel %vm3313, %v3389, %v3385
    %v3391 = vlaneseq
    %v3392 = vshrl.u32 %v3391, 7
    %v3393 = vsub.s32 %v687, %v3392
    %v3394 = vrot.slane %v3256, %v3393
    %v3395 = vlaneseq
    %v3396 = vshrl.u32 %v3395, 7
    %v3397 = vsub.s32 %v3294, %v3396
    %v3398 = vrot.slane %v3259, %v3397
    %v3399 = vsel %vm3299, %v3398, %v3394
    %v3400 = vlaneseq
    %v3401 = vshrl.u32 %v3400, 7
    %v3402 = vsub.s32 %v3301, %v3401
    %v3403 = vrot.slane %v3262, %v3402
    %v3404 = vsel %vm3306, %v3403, %v3399
    %v3405 = vlaneseq
    %v3406 = vshrl.u32 %v3405, 7
    %v3407 = vsub.s32 %v3308, %v3406
    %v3408 = vrot.slane %v3265, %v3407
    %v3409 = vsel %vm3313, %v3408, %v3404
    %v3410 = vlaneseq
    %v3411 = vshrl.u32 %v3410, 7
    %v3412 = vsub.s32 %v687, %v3411
    %v3413 = vrot.slane %v3268, %v3412
    %v3414 = vlaneseq
    %v3415 = vshrl.u32 %v3414, 7
    %v3416 = vsub.s32 %v3294, %v3415
    %v3417 = vrot.slane %v3271, %v3416
    %v3418 = vsel %vm3299, %v3417, %v3413
    %v3419 = vlaneseq
    %v3420 = vshrl.u32 %v3419, 7
    %v3421 = vsub.s32 %v3301, %v3420
    %v3422 = vrot.slane %v3274, %v3421
    %v3423 = vsel %vm3306, %v3422, %v3418
    %v3424 = vlaneseq
    %v3425 = vshrl.u32 %v3424, 7
    %v3426 = vsub.s32 %v3308, %v3425
    %v3427 = vrot.slane %v3277, %v3426
    %v3428 = vsel %vm3313, %v3427, %v3423
    %v3429 = vlaneseq
    %v3430 = vshrl.u32 %v3429, 7
    %v3431 = vsub.s32 %v687, %v3430
    %v3432 = vrot.slane %v3280, %v3431
    %v3433 = vlaneseq
    %v3434 = vshrl.u32 %v3433, 7
    %v3435 = vsub.s32 %v3294, %v3434
    %v3436 = vrot.slane %v3283, %v3435
    %v3437 = vsel %vm3299, %v3436, %v3432
    %v3438 = vlaneseq
    %v3439 = vshrl.u32 %v3438, 7
    %v3440 = vsub.s32 %v3301, %v3439
    %v3441 = vrot.slane %v3286, %v3440
    %v3442 = vsel %vm3306, %v3441, %v3437
    %v3443 = vlaneseq
    %v3444 = vshrl.u32 %v3443, 7
    %v3445 = vsub.s32 %v3308, %v3444
    %v3446 = vrot.slane %v3289, %v3445
    %v3447 = vsel %vm3313, %v3446, %v3442
    %v3448 = vsel %vm720, %v3333, %v3314
    %v3449 = vsel %vm722, %v3352, %v3448
    %v3450 = vsel %vm724, %v3371, %v3449
    %v3451 = vsel %vm726, %v3390, %v3450
    %v3452 = vsel %vm728, %v3409, %v3451
    %v3453 = vsel %vm730, %v3428, %v3452
    %v3454 = vsel %vm732, %v3447, %v3453
    %3456 = vst.msk [vmem:[#allocation2] sm:$0xff] %vm51, %v3454
    // Predicated region
    $region18: #{tpu_custom_call.1} parent=1 // pred_check
      _
    $region19: #{tpu_custom_call.1} parent=1 // pred_check_branch
      %3458 = sbr.rel (0) target = $region21
    $region20: #{tpu_custom_call.1} parent=1 // pred_region
      %s3460 = ssub.s32 128, 128
      %3461 = vsyncadd [#allocation3], %s3460
      %s3463 = sshll.u32 [#allocation2], 4
      %s3464 = int_to_ptr.vmem [resolvable:$true] %s3463
      %3466 = dma.vmem_to_hbm [thread:$0]  %s3464, 128, %s4, [#allocation3]
    $region21: #{tpu_custom_call.1} parent=1 // pred_fallthru
      _
    // Predicated region
    $region22: #{tpu_custom_call.1} parent=1 // pred_check
      _
    $region23: #{tpu_custom_call.1} parent=1 // pred_check_branch
      %3468 = sbr.rel (0) target = $region25
    $region24: #{tpu_custom_call.1} parent=1 // pred_region
      %3469 = dma.done [#allocation3], 128
    $region25: #{tpu_custom_call.1} parent=1 // pred_fallthru
      _
    %3470 = vsyncpa [#allocation3], 1

</llo_original>
